<compile_context>
chip_gen: v7x
topology: tpu7x:2x2x1
jax: 0.10.0
libtpu: 0.0.40
codegen_flags: <defaults>
</compile_context>

<pallas_src>
import functools

import jax
import jax.numpy as jnp
from jax.experimental import pallas as pl
from jax.experimental.pallas import tpu as pltpu


def _bilinear_matrix(out_size, in_size, dtype=jnp.float32):
    """Dense interpolation matrix matching F.interpolate(mode='bilinear',
    align_corners=False) along one spatial axis."""
    i = jnp.arange(out_size, dtype=jnp.float32)
    scale = in_size / out_size
    src = (i + 0.5) * scale - 0.5
    src = jnp.maximum(src, 0.0)                      # PyTorch clamps negatives
    i0 = jnp.floor(src)
    frac = src - i0
    i0 = i0.astype(jnp.int32)
    i1 = jnp.minimum(i0 + 1, in_size - 1)
    m = (jax.nn.one_hot(i0, in_size, dtype=jnp.float32) * (1.0 - frac)[:, None]
         + jax.nn.one_hot(i1, in_size, dtype=jnp.float32) * frac[:, None])
    return m.astype(dtype)


# --------------------------------------------------------------------------------------
# Pass 1: local embedding + fused global branch + bilinear upsample + combine + pool sum
# --------------------------------------------------------------------------------------
def _inject_pass1_kernel(x_l_ref, x_g_ref, w_loc_ref, b_loc_ref,
                         w_g_ref, b_g_ref, ah_ref, aw_ref,
                         pre_ref, pool_ref, g_scratch):
    i = pl.program_id(1)
    cout = pre_ref.shape[3]
    c2 = w_g_ref.shape[1]                            # 2 * cout

    # ---- once per batch element (i == 0): fused global branch at low resolution ----
    @pl.when(i == 0)
    def _():
        hh, ww, cin = x_g_ref.shape[1], x_g_ref.shape[2], x_g_ref.shape[3]
        xg2 = x_g_ref[0].reshape(hh * ww, cin)                               # bf16
        g = jnp.dot(xg2, w_g_ref[...],
                    preferred_element_type=jnp.float32) + b_g_ref[...]       # (hw, 2C) f32
        # h_sigmoid only on the global_act half (first cout lanes)
        lane = jax.lax.broadcasted_iota(jnp.int32, g.shape, dimension=1)
        g = jnp.where(lane < cout,
                      jnp.clip(g + 3.0, 0.0, 6.0) * (1.0 / 6.0), g)
        g3 = g.reshape(hh, ww, c2).astype(jnp.bfloat16)
        # bilinear upsample along W, once per batch element (amortized over H tiles)
        gw = jnp.einsum('Jw,hwc->hJc', aw_ref[...], g3,
                        preferred_element_type=jnp.float32)                  # (h, W, 2C)
        g_scratch[...] = gw.astype(g_scratch.dtype)
        pool_ref[...] = jnp.zeros_like(pool_ref)

    # ---- per H tile: local embedding + H-axis upsample + combine ----
    th, W, cin = x_l_ref.shape[1], x_l_ref.shape[2], x_l_ref.shape[3]
    xl2 = x_l_ref[0].reshape(th * W, cin)                                    # bf16
    loc = (jnp.dot(xl2, w_loc_ref[...], preferred_element_type=jnp.float32)
           + b_loc_ref[...]).reshape(th, W, cout)                            # f32
    up = jnp.einsum('th,hwc->twc', ah_ref[...], g_scratch[...],
                    preferred_element_type=jnp.float32)                      # (th, W, 2C)
    pre = loc * up[..., :cout] + up[..., cout:]                              # f32
    pre_ref[0] = pre.astype(pre_ref.dtype)                                   # bf16 to HBM
    # accumulate pooled channel sums in f32 (pre-rounding), reduced across H tiles
    pool_ref[...] += jnp.sum(pre, axis=(0, 1), keepdims=True)


# --------------------------------------------------------------------------------------
# Pass 2: channel attention gate + cat_conv (concat([pre * y, x_l]) -> 1x1 conv + BN)
# --------------------------------------------------------------------------------------
def _inject_pass2_kernel(pre_ref, x_l_ref, pool_ref, w1_ref, b1_ref, w2t_ref, b2_ref,
                         w_cat_pre_ref, w_cat_xl_ref, b_cat_ref, out_ref, *, inv_hw):
    th, W, cout = pre_ref.shape[1], pre_ref.shape[2], pre_ref.shape[3]
    cin = x_l_ref.shape[3]

    # Squeeze-excite gate from the pooled vector (tiny: one small matvec + VPU/EUP).
    pooled = pool_ref[0] * inv_hw                                             # (1, cout) f32
    t1 = jnp.dot(pooled, w1_ref[...],
                 preferred_element_type=jnp.float32) + b1_ref[...]            # (1, hid)
    t1 = jnp.maximum(t1, 0.0)
    # second FC done in "column" orientation so the gate lands as (cout, 1) with no
    # in-kernel transpose: z[c] = sum_h w2t[c,h] * t1[h] + b2[c]
    z = jnp.sum(w2t_ref[...] * t1, axis=1, keepdims=True) + b2_ref[...]       # (cout, 1)
    y = jax.nn.sigmoid(z)                                                     # (cout, 1)

    # Fold the per-channel gate into the cat-conv weight rows: a (Cout, Cout) scale per
    # tile instead of scaling the whole (th*W, Cout) activation slab on the VPU.
    w_pre = (w_cat_pre_ref[...] * y).astype(pre_ref.dtype)                    # bf16 for MXU

    pre2 = pre_ref[0].reshape(th * W, cout)                                   # bf16, no cast
    xl2 = x_l_ref[0].reshape(th * W, cin)
    out = (jnp.dot(pre2, w_pre, preferred_element_type=jnp.float32)
           + jnp.dot(xl2, w_cat_xl_ref[...], preferred_element_type=jnp.float32)
           + b_cat_ref[...])
    out_ref[0] = out.reshape(th, W, cout).astype(out_ref.dtype)


# --------------------------------------------------------------------------------------
# Wrapper
# --------------------------------------------------------------------------------------
def injection_multi_sum(x_l, x_g, params, *, tile_h=None):
    """x_l: (B, H, W, Cin) local features; x_g: (B, h, w, Cin) global features.
    Returns (B, H, W, Cout) float32."""
    B, H, W, Cin = x_l.shape
    Bg, h, w, Cin_g = x_g.shape
    assert B == Bg and Cin == Cin_g
    Cout = params['w_loc'].shape[1]
    hid = params['w1'].shape[1]

    if tile_h is None:
        tile_h = H
        if H % 8 == 0:
            for cand in range(8, min(H, 64) + 1, 8):
                if H % cand == 0:
                    tile_h = cand
    assert H % tile_h == 0
    n_th = H // tile_h
    grid = (B, n_th)

    bf16 = jnp.bfloat16
    x_l_bf = x_l.astype(bf16)
    x_g_bf = x_g.astype(bf16)
    ah = _bilinear_matrix(H, h).astype(bf16)
    aw = _bilinear_matrix(W, w).astype(bf16)

    def const_spec(shape):
        nd = len(shape)
        return pl.BlockSpec(shape, lambda b, i, _nd=nd: (0,) * _nd)

    # ---- pass 1: pre-CA features (bf16) + pooled channel sums (f32) ----
    pre, pool = pl.pallas_call(
        _inject_pass1_kernel,
        out_shape=(jax.ShapeDtypeStruct((B, H, W, Cout), bf16),
                   jax.ShapeDtypeStruct((B, 1, Cout), jnp.float32)),
        grid=grid,
        in_specs=[
            pl.BlockSpec((1, tile_h, W, Cin), lambda b, i: (b, i, 0, 0)),
            pl.BlockSpec((1, h, w, Cin), lambda b, i: (b, 0, 0, 0)),
            const_spec((Cin, Cout)), const_spec((1, Cout)),
            const_spec((Cin, 2 * Cout)), const_spec((1, 2 * Cout)),
            pl.BlockSpec((tile_h, h), lambda b, i: (i, 0)),
            const_spec((W, w)),
        ],
        out_specs=(
            pl.BlockSpec((1, tile_h, W, Cout), lambda b, i: (b, i, 0, 0)),
            pl.BlockSpec((1, 1, Cout), lambda b, i: (b, 0, 0)),
        ),
        scratch_shapes=[pltpu.VMEM((h, W, 2 * Cout), bf16)],
        compiler_params=pltpu.CompilerParams(
            dimension_semantics=("parallel", "arbitrary")),
    )(x_l_bf, x_g_bf,
      params['w_loc'], params['b_loc'], params['w_g'], params['b_g'],
      ah, aw)

    # ---- pass 2: channel attention gate + cat_conv ----
    out = pl.pallas_call(
        functools.partial(_inject_pass2_kernel, inv_hw=1.0 / float(H * W)),
        out_shape=jax.ShapeDtypeStruct((B, H, W, Cout), jnp.float32),
        grid=grid,
        in_specs=[
            pl.BlockSpec((1, tile_h, W, Cout), lambda b, i: (b, i, 0, 0)),
            pl.BlockSpec((1, tile_h, W, Cin), lambda b, i: (b, i, 0, 0)),
            pl.BlockSpec((1, 1, Cout), lambda b, i: (b, 0, 0)),
            const_spec((Cout, hid)), const_spec((1, hid)),
            const_spec((Cout, hid)), const_spec((Cout, 1)),
            const_spec((Cout, Cout)), const_spec((Cin, Cout)),
            const_spec((1, Cout)),
        ],
        out_specs=pl.BlockSpec((1, tile_h, W, Cout), lambda b, i: (b, i, 0, 0)),
        compiler_params=pltpu.CompilerParams(
            dimension_semantics=("parallel", "parallel")),
    )(pre, x_l_bf, pool,
      params['w1'], params['b1'], params['w2t'], params['b2'],
      params['w_cat_pre'], params['w_cat_xl'], params['b_cat'])
    return out


# --------------------------------------------------------------------------------------
# Parameter construction (BN folded, global branch fused, MXU operands in bf16)
# --------------------------------------------------------------------------------------
def _make_params(key, cin, cout, squeeze=16):
    hid = max(cout // squeeze, 1)
    ks = jax.random.split(key, 12)
    f32, bf16 = jnp.float32, jnp.bfloat16

    def bn(kg, kb, km, kv, n):
        gamma = jax.random.uniform(kg, (n,), minval=0.5, maxval=1.5)
        beta = jax.random.normal(kb, (n,)) * 0.1
        mean = jax.random.normal(km, (n,)) * 0.1
        var = jax.random.uniform(kv, (n,), minval=0.5, maxval=1.5)
        scale = gamma / jnp.sqrt(var + 1e-5)
        bias = beta - mean * scale
        return scale, bias

    def conv_bn(kw, kbn, cin_, cout_):
        w = jax.random.normal(kw, (cin_, cout_)) * (1.0 / jnp.sqrt(cin_))
        s, b = bn(*jax.random.split(kbn, 4), cout_)
        return w * s[None, :], b                       # fold BN scale into weights

    w_loc, b_loc = conv_bn(ks[0], ks[1], cin, cout)
    w_ga, b_ga = conv_bn(ks[2], ks[3], cin, cout)
    w_ge, b_ge = conv_bn(ks[4], ks[5], cin, cout)
    w_g = jnp.concatenate([w_ga, w_ge], axis=1)        # fused global branch
    b_g = jnp.concatenate([b_ga, b_ge], axis=0)

    w1 = jax.random.normal(ks[6], (cout, hid)) * (1.0 / jnp.sqrt(cout))
    b1 = jax.random.normal(ks[7], (hid,)) * 0.1
    w2 = jax.random.normal(ks[8], (hid, cout)) * (1.0 / jnp.sqrt(hid))
    b2 = jax.random.normal(ks[9], (cout,)) * 0.1

    w_cat, b_cat = conv_bn(ks[10], ks[11], cout + cin, cout)

    return dict(
        w_loc=w_loc.astype(bf16), b_loc=b_loc.reshape(1, cout).astype(f32),
        w_g=w_g.astype(bf16), b_g=b_g.reshape(1, 2 * cout).astype(f32),
        w1=w1.astype(f32), b1=b1.reshape(1, hid).astype(f32),
        w2t=jnp.transpose(w2).astype(f32),             # (cout, hid) for column-gate math
        b2=b2.reshape(cout, 1).astype(f32),
        w_cat_pre=w_cat[:cout].astype(f32),            # f32: gate folded in-kernel, then bf16
        w_cat_xl=w_cat[cout:].astype(bf16),
        b_cat=b_cat.reshape(1, cout).astype(f32),
    )


# --------------------------------------------------------------------------------------
# Pure-JAX reference mirroring the kernel's bf16 rounding points
# --------------------------------------------------------------------------------------
def _reference(x_l, x_g, p, ah, aw, cout):
    f32, bf16 = jnp.float32, jnp.bfloat16
    xl = x_l.astype(bf16).astype(f32)
    xg = x_g.astype(bf16).astype(f32)
    ah_f = ah.astype(f32)
    aw_f = aw.astype(f32)

    loc = jnp.einsum('bhwc,cd->bhwd', xl, p['w_loc'].astype(f32)) + p['b_loc']
    g = jnp.einsum('bhwc,cd->bhwd', xg, p['w_g'].astype(f32)) + p['b_g']
    ga = jnp.clip(g[..., :cout] + 3.0, 0.0, 6.0) * (1.0 / 6.0)
    gcat = jnp.concatenate([ga, g[..., cout:]], axis=-1).astype(bf16).astype(f32)
    gw = jnp.einsum('Jw,bhwc->bhJc', aw_f, gcat).astype(bf16).astype(f32)   # W pass
    up = jnp.einsum('Hh,bhJc->bHJc', ah_f, gw)                              # H pass
    pre_f = loc * up[..., :cout] + up[..., cout:]
    pre = pre_f.astype(bf16).astype(f32)

    pooled = jnp.mean(pre_f, axis=(1, 2))                                   # (B, cout) f32
    t1 = jnp.maximum(pooled @ p['w1'] + p['b1'], 0.0)                       # (B, hid)
    z = jnp.einsum('bh,ch->bc', t1, p['w2t']) + p['b2'][:, 0][None, :]      # (B, cout)
    y = 1.0 / (1.0 + jnp.exp(-z))
    w_pre = (p['w_cat_pre'][None] * y[:, :, None]).astype(bf16).astype(f32)  # (B, cout, cout)
    out = (jnp.einsum('bhwc,bcd->bhwd', pre, w_pre)
           + jnp.einsum('bhwc,cd->bhwd', xl, p['w_cat_xl'].astype(f32))
           + p['b_cat'])
    return out


if __name__ == "__main__":
    B, Cin, Cout = 2, 16, 32
    H = W = 16            # high-res (local) spatial size
    h = w = 8             # low-res (global) spatial size

    key = jax.random.PRNGKey(0)
    kx, kg, kp = jax.random.split(key, 3)
    x_l = jax.random.normal(kx, (B, H, W, Cin), dtype=jnp.float32)
    x_g = jax.random.normal(kg, (B, h, w, Cin), dtype=jnp.float32)
    params = _make_params(kp, Cin, Cout)

    out = injection_multi_sum(x_l, x_g, params, tile_h=8)   # grid (2, 2): exercises tiling
    out = jax.block_until_ready(out)
    assert out.shape == (B, H, W, Cout)

    ref = _reference(x_l, x_g, params,
                     _bilinear_matrix(H, h).astype(jnp.bfloat16),
                     _bilinear_matrix(W, w).astype(jnp.bfloat16),
                     Cout)
    err = float(jnp.max(jnp.abs(out - ref)))
    assert jnp.allclose(out, ref, atol=2e-2, rtol=2e-2), f"mismatch vs reference: {err}"

    print("KERNEL_OK")
</pallas_src>

<mosaic_0001>
module attributes {stable_mosaic.version = 11 : i64} {
  func.func @_inject_pass1_kernel(%arg0: i32, %arg1: i32, %arg2: memref<1x8x16x16xbf16, #tpu.memory_space<vmem>>, %arg3: memref<1x8x8x16xbf16, #tpu.memory_space<vmem>>, %arg4: memref<16x32xbf16, #tpu.memory_space<vmem>>, %arg5: memref<1x32xf32, #tpu.memory_space<vmem>>, %arg6: memref<16x64xbf16, #tpu.memory_space<vmem>>, %arg7: memref<1x64xf32, #tpu.memory_space<vmem>>, %arg8: memref<8x8xbf16, #tpu.memory_space<vmem>>, %arg9: memref<16x8xbf16, #tpu.memory_space<vmem>>, %arg10: memref<1x8x16x32xbf16, #tpu.memory_space<vmem>>, %arg11: memref<1x1x32xf32, #tpu.memory_space<vmem>>, %arg12: memref<8x16x64xbf16, #tpu.memory_space<vmem>>) attributes {dimension_semantics = [#tpu.dimension_semantics<parallel>, #tpu.dimension_semantics<arbitrary>], iteration_bounds = array<i64: 2, 2>, scalar_prefetch = 0 : i64, scratch_operands = 1 : i64, tpu.core_type = #tpu.core_type<tc>, window_params = [{transform_indices = @transform_0, window_bounds = array<i64: 1, 8, 16, 16>}, {transform_indices = @transform_1, window_bounds = array<i64: 1, 8, 8, 16>}, {pipeline_mode = #tpu.pipeline_mode<synchronous>, transform_indices = @transform_2, window_bounds = array<i64: 16, 32>}, {pipeline_mode = #tpu.pipeline_mode<synchronous>, transform_indices = @transform_3, window_bounds = array<i64: 1, 32>}, {pipeline_mode = #tpu.pipeline_mode<synchronous>, transform_indices = @transform_4, window_bounds = array<i64: 16, 64>}, {pipeline_mode = #tpu.pipeline_mode<synchronous>, transform_indices = @transform_5, window_bounds = array<i64: 1, 64>}, {transform_indices = @transform_6, window_bounds = array<i64: 8, 8>}, {pipeline_mode = #tpu.pipeline_mode<synchronous>, transform_indices = @transform_7, window_bounds = array<i64: 16, 8>}, {transform_indices = @transform_8, window_bounds = array<i64: 1, 8, 16, 32>}, {transform_indices = @transform_9, window_bounds = array<i64: 1, 1, 32>}]} {
    %c0_i32 = arith.constant 0 : i32
    %0 = arith.cmpi eq, %arg1, %c0_i32 : i32
    %1 = arith.extui %0 : i1 to i32
    %c0_i32_0 = arith.constant 0 : i32
    %2 = arith.cmpi ne, %1, %c0_i32_0 : i32
    scf.if %2 {
      %c0_25 = arith.constant 0 : index
      %c0_26 = arith.constant 0 : index
      %c0_27 = arith.constant 0 : index
      %c0_28 = arith.constant 0 : index
      %28 = vector.load %arg3[%c0_25, %c0_26, %c0_27, %c0_28] : memref<1x8x8x16xbf16, #tpu.memory_space<vmem>>, vector<1x8x8x16xbf16>
      %29 = vector.shape_cast %28 : vector<1x8x8x16xbf16> to vector<8x8x16xbf16>
      %30 = vector.shape_cast %29 : vector<8x8x16xbf16> to vector<64x16xbf16>
      %c0_29 = arith.constant 0 : index
      %c0_30 = arith.constant 0 : index
      %31 = vector.load %arg6[%c0_29, %c0_30] : memref<16x64xbf16, #tpu.memory_space<vmem>>, vector<16x64xbf16>
      %cst_31 = arith.constant dense<0.000000e+00> : vector<64x64xf32>
      %32 = tpu.matmul %30, %31, %cst_31 {dimension_numbers = #tpu.dot_dimension_numbers<[1], [0], [0], [1], [0, 0, 1, 1], [], []>} : vector<64x16xbf16>, vector<16x64xbf16>, vector<64x64xf32> -> vector<64x64xf32>
      %c0_32 = arith.constant 0 : index
      %c0_33 = arith.constant 0 : index
      %33 = vector.load %arg7[%c0_32, %c0_33] : memref<1x64xf32, #tpu.memory_space<vmem>>, vector<1x64xf32>
      %34 = vector.broadcast %33 : vector<1x64xf32> to vector<64x64xf32>
      %35 = arith.addf %32, %34 : vector<64x64xf32>
      %36 = tpu.iota {dimensions = array<i32: 1>} : vector<64x64xi32>
      %c32_i32 = arith.constant 32 : i32
      %37 = vector.broadcast %c32_i32 : i32 to vector<64x64xi32>
      %38 = arith.cmpi slt, %36, %37 : vector<64x64xi32>
      %cst_34 = arith.constant 3.000000e+00 : f32
      %39 = vector.broadcast %cst_34 : f32 to vector<64x64xf32>
      %40 = arith.addf %35, %39 : vector<64x64xf32>
      %cst_35 = arith.constant 0.000000e+00 : f32
      %cst_36 = arith.constant 6.000000e+00 : f32
      %41 = vector.broadcast %cst_35 : f32 to vector<64x64xf32>
      %42 = arith.maximumf %41, %40 : vector<64x64xf32>
      %43 = vector.broadcast %cst_36 : f32 to vector<64x64xf32>
      %44 = arith.minimumf %43, %42 : vector<64x64xf32>
      %cst_37 = arith.constant 0.166666672 : f32
      %45 = vector.broadcast %cst_37 : f32 to vector<64x64xf32>
      %46 = arith.mulf %44, %45 : vector<64x64xf32>
      %47 = arith.select %38, %46, %35 : vector<64x64xi1>, vector<64x64xf32>
      %48 = vector.shape_cast %47 : vector<64x64xf32> to vector<8x8x64xf32>
      %49 = arith.truncf %48 : vector<8x8x64xf32> to vector<8x8x64xbf16>
      %c0_38 = arith.constant 0 : index
      %c0_39 = arith.constant 0 : index
      %50 = vector.load %arg9[%c0_38, %c0_39] : memref<16x8xbf16, #tpu.memory_space<vmem>>, vector<16x8xbf16>
      "tpu.trace_start"() <{level = 10 : i32, message = "Jw,hwc->hJc"}> : () -> ()
      %cst_40 = arith.constant dense<0.000000e+00> : vector<8x64x16xf32>
      %51 = tpu.matmul %49, %50, %cst_40 {dimension_numbers = #tpu.dot_dimension_numbers<[1], [1], [0, 2], [0], [0, 0, 0, 2, 1, 0], [], []>} : vector<8x8x64xbf16>, vector<16x8xbf16>, vector<8x64x16xf32> -> vector<8x64x16xf32>
      %52 = tpu.transpose %51, [0, 2, 1] : vector<8x64x16xf32> -> vector<8x16x64xf32>
      "tpu.trace_stop"() : () -> ()
      %53 = arith.truncf %52 : vector<8x16x64xf32> to vector<8x16x64xbf16>
      %c0_41 = arith.constant 0 : index
      %c0_42 = arith.constant 0 : index
      %c0_43 = arith.constant 0 : index
      %54 = vector.load %arg12[%c0_41, %c0_42, %c0_43] : memref<8x16x64xbf16, #tpu.memory_space<vmem>>, vector<8x16x64xbf16>
      tpu.vector_store %arg12[%c0_41, %c0_42, %c0_43], %53 {strides = array<i32>} : memref<8x16x64xbf16, #tpu.memory_space<vmem>>, vector<8x16x64xbf16>,
      %cst_44 = arith.constant 0.000000e+00 : f32
      %55 = vector.broadcast %cst_44 : f32 to vector<1x1x32xf32>
      %c0_45 = arith.constant 0 : index
      %c0_46 = arith.constant 0 : index
      %c0_47 = arith.constant 0 : index
      %56 = vector.load %arg11[%c0_45, %c0_46, %c0_47] : memref<1x1x32xf32, #tpu.memory_space<vmem>>, vector<1x1x32xf32>
      tpu.vector_store %arg11[%c0_45, %c0_46, %c0_47], %55 {strides = array<i32>} : memref<1x1x32xf32, #tpu.memory_space<vmem>>, vector<1x1x32xf32>,
    } else {
    }
    %c0 = arith.constant 0 : index
    %c0_1 = arith.constant 0 : index
    %c0_2 = arith.constant 0 : index
    %c0_3 = arith.constant 0 : index
    %3 = vector.load %arg2[%c0, %c0_1, %c0_2, %c0_3] : memref<1x8x16x16xbf16, #tpu.memory_space<vmem>>, vector<1x8x16x16xbf16>
    %4 = vector.shape_cast %3 : vector<1x8x16x16xbf16> to vector<8x16x16xbf16>
    %5 = vector.shape_cast %4 : vector<8x16x16xbf16> to vector<128x16xbf16>
    %c0_4 = arith.constant 0 : index
    %c0_5 = arith.constant 0 : index
    %6 = vector.load %arg4[%c0_4, %c0_5] : memref<16x32xbf16, #tpu.memory_space<vmem>>, vector<16x32xbf16>
    %cst = arith.constant dense<0.000000e+00> : vector<128x32xf32>
    %7 = tpu.matmul %5, %6, %cst {dimension_numbers = #tpu.dot_dimension_numbers<[1], [0], [0], [1], [0, 0, 1, 1], [], []>} : vector<128x16xbf16>, vector<16x32xbf16>, vector<128x32xf32> -> vector<128x32xf32>
    %c0_6 = arith.constant 0 : index
    %c0_7 = arith.constant 0 : index
    %8 = vector.load %arg5[%c0_6, %c0_7] : memref<1x32xf32, #tpu.memory_space<vmem>>, vector<1x32xf32>
    %9 = vector.broadcast %8 : vector<1x32xf32> to vector<128x32xf32>
    %10 = arith.addf %7, %9 : vector<128x32xf32>
    %11 = vector.shape_cast %10 : vector<128x32xf32> to vector<8x16x32xf32>
    %c0_8 = arith.constant 0 : index
    %c0_9 = arith.constant 0 : index
    %12 = vector.load %arg8[%c0_8, %c0_9] : memref<8x8xbf16, #tpu.memory_space<vmem>>, vector<8x8xbf16>
    %c0_10 = arith.constant 0 : index
    %c0_11 = arith.constant 0 : index
    %c0_12 = arith.constant 0 : index
    %13 = vector.load %arg12[%c0_10, %c0_11, %c0_12] : memref<8x16x64xbf16, #tpu.memory_space<vmem>>, vector<8x16x64xbf16>
    "tpu.trace_start"() <{level = 10 : i32, message = "th,hwc->twc"}> : () -> ()
    %cst_13 = arith.constant dense<0.000000e+00> : vector<8x16x64xf32>
    %14 = tpu.matmul %12, %13, %cst_13 {dimension_numbers = #tpu.dot_dimension_numbers<[1], [0], [0], [1, 2], [0, 0, 1, 1, 1, 2], [], []>} : vector<8x8xbf16>, vector<8x16x64xbf16>, vector<8x16x64xf32> -> vector<8x16x64xf32>
    "tpu.trace_stop"() : () -> ()
    %15 = vector.extract_strided_slice %14 {offsets = [0, 0, 0], sizes = [8, 16, 32], strides = [1, 1, 1]} : vector<8x16x64xf32> to vector<8x16x32xf32>
    %16 = arith.mulf %11, %15 : vector<8x16x32xf32>
    %17 = vector.extract_strided_slice %14 {offsets = [0, 0, 32], sizes = [8, 16, 32], strides = [1, 1, 1]} : vector<8x16x64xf32> to vector<8x16x32xf32>
    %18 = arith.addf %16, %17 : vector<8x16x32xf32>
    %19 = arith.truncf %18 : vector<8x16x32xf32> to vector<8x16x32xbf16>
    %c0_14 = arith.constant 0 : index
    %c0_15 = arith.constant 0 : index
    %c0_16 = arith.constant 0 : index
    %c0_17 = arith.constant 0 : index
    %20 = vector.load %arg10[%c0_14, %c0_15, %c0_16, %c0_17] : memref<1x8x16x32xbf16, #tpu.memory_space<vmem>>, vector<1x8x16x32xbf16>
    %21 = vector.shape_cast %20 : vector<1x8x16x32xbf16> to vector<8x16x32xbf16>
    %22 = vector.shape_cast %19 : vector<8x16x32xbf16> to vector<1x8x16x32xbf16>
    tpu.vector_store %arg10[%c0_14, %c0_15, %c0_16, %c0_17], %22 {strides = array<i32>} : memref<1x8x16x32xbf16, #tpu.memory_space<vmem>>, vector<1x8x16x32xbf16>,
    %c0_18 = arith.constant 0 : index
    %c0_19 = arith.constant 0 : index
    %c0_20 = arith.constant 0 : index
    %23 = vector.load %arg11[%c0_18, %c0_19, %c0_20] : memref<1x1x32xf32, #tpu.memory_space<vmem>>, vector<1x1x32xf32>
    %cst_21 = arith.constant dense<0.000000e+00> : vector<32xf32>
    %24 = vector.multi_reduction <add>, %18, %cst_21 [0, 1] : vector<8x16x32xf32> to vector<32xf32>
    %25 = vector.shape_cast %24 : vector<32xf32> to vector<1x1x32xf32>
    %26 = arith.addf %23, %25 : vector<1x1x32xf32>
    %c0_22 = arith.constant 0 : index
    %c0_23 = arith.constant 0 : index
    %c0_24 = arith.constant 0 : index
    %27 = vector.load %arg11[%c0_22, %c0_23, %c0_24] : memref<1x1x32xf32, #tpu.memory_space<vmem>>, vector<1x1x32xf32>
    tpu.vector_store %arg11[%c0_22, %c0_23, %c0_24], %26 {strides = array<i32>} : memref<1x1x32xf32, #tpu.memory_space<vmem>>, vector<1x1x32xf32>,
    return
  }
  func.func @transform_0(%arg0: i32, %arg1: i32) -> (i32, i32, i32, i32) {
    %c0_i32 = arith.constant 0 : i32
    %c0_i32_0 = arith.constant 0 : i32
    %c0_i32_1 = arith.constant 0 : i32
    return %arg0, %arg1, %c0_i32, %c0_i32_0 : i32, i32, i32, i32
  }
  func.func @transform_1(%arg0: i32, %arg1: i32) -> (i32, i32, i32, i32) {
    %c0_i32 = arith.constant 0 : i32
    %c0_i32_0 = arith.constant 0 : i32
    %c0_i32_1 = arith.constant 0 : i32
    %c0_i32_2 = arith.constant 0 : i32
    return %arg0, %c0_i32, %c0_i32_0, %c0_i32_1 : i32, i32, i32, i32
  }
  func.func @transform_2(%arg0: i32, %arg1: i32) -> (i32, i32) {
    %c0_i32 = arith.constant 0 : i32
    %c0_i32_0 = arith.constant 0 : i32
    %c0_i32_1 = arith.constant 0 : i32
    return %c0_i32, %c0_i32_0 : i32, i32
  }
  func.func @transform_3(%arg0: i32, %arg1: i32) -> (i32, i32) {
    %c0_i32 = arith.constant 0 : i32
    %c0_i32_0 = arith.constant 0 : i32
    %c0_i32_1 = arith.constant 0 : i32
    return %c0_i32, %c0_i32_0 : i32, i32
  }
  func.func @transform_4(%arg0: i32, %arg1: i32) -> (i32, i32) {
    %c0_i32 = arith.constant 0 : i32
    %c0_i32_0 = arith.constant 0 : i32
    %c0_i32_1 = arith.constant 0 : i32
    return %c0_i32, %c0_i32_0 : i32, i32
  }
  func.func @transform_5(%arg0: i32, %arg1: i32) -> (i32, i32) {
    %c0_i32 = arith.constant 0 : i32
    %c0_i32_0 = arith.constant 0 : i32
    %c0_i32_1 = arith.constant 0 : i32
    return %c0_i32, %c0_i32_0 : i32, i32
  }
  func.func @transform_6(%arg0: i32, %arg1: i32) -> (i32, i32) {
    %c0_i32 = arith.constant 0 : i32
    %c0_i32_0 = arith.constant 0 : i32
    return %arg1, %c0_i32 : i32, i32
  }
  func.func @transform_7(%arg0: i32, %arg1: i32) -> (i32, i32) {
    %c0_i32 = arith.constant 0 : i32
    %c0_i32_0 = arith.constant 0 : i32
    %c0_i32_1 = arith.constant 0 : i32
    return %c0_i32, %c0_i32_0 : i32, i32
  }
  func.func @transform_8(%arg0: i32, %arg1: i32) -> (i32, i32, i32, i32) {
    %c0_i32 = arith.constant 0 : i32
    %c0_i32_0 = arith.constant 0 : i32
    %c0_i32_1 = arith.constant 0 : i32
    return %arg0, %arg1, %c0_i32, %c0_i32_0 : i32, i32, i32, i32
  }
  func.func @transform_9(%arg0: i32, %arg1: i32) -> (i32, i32, i32) {
    %c0_i32 = arith.constant 0 : i32
    %c0_i32_0 = arith.constant 0 : i32
    %c0_i32_1 = arith.constant 0 : i32
    return %arg0, %c0_i32, %c0_i32_0 : i32, i32, i32
  }
}

</mosaic_0001>

<llo_original>
// kernel: tpu_custom_call.1
$region0: #{tpu_custom_call.1}
  #allocation0 [shape = 'u32[]', space=smem, size = 0x4, offset = 0x4, fixed_abs, tag = 'smem constant byte address 0x4 - core index']
  #allocation1 [shape = 'u32[144,128]{1,0:T(1,128)}', space=vmem, size = 0x12000, scoped, tag = 'internal scratch']
  #allocation2 [shape = 'bf16[8,16,64]{2,1,0:T(16,128)(2,1)}', space=vmem, size = 0x8000, scoped, tag = 'scratch operand']
  %s0 = inlined_call_operand.hbm [shape: bf16[2,16,16,16], index: 0, kind: input, shape index: {}]
  %s1 = inlined_call_operand.hbm [shape: bf16[2,8,8,16], index: 1, kind: input, shape index: {}]
  %s2 = inlined_call_operand.vmem [shape: bf16[16,32], index: 2, kind: input, shape index: {}]
  %s3 = inlined_call_operand.vmem [shape: f32[1,32], index: 3, kind: input, shape index: {}]
  %s4 = inlined_call_operand.vmem [shape: bf16[16,64], index: 4, kind: input, shape index: {}]
  %s5 = inlined_call_operand.vmem [shape: f32[1,64], index: 5, kind: input, shape index: {}]
  %s6 = inlined_call_operand.vmem [shape: bf16[16,8], index: 6, kind: input, shape index: {}]
  %s7 = inlined_call_operand.vmem [shape: bf16[16,8], index: 7, kind: input, shape index: {}]
  %s8 = inlined_call_operand.hbm [shape: bf16[2,16,16,32], index: 8, kind: output, shape index: {0}]
  %s9 = inlined_call_operand.hbm [shape: f32[2,1,32], index: 9, kind: output, shape index: {1}]
  %10 = xla_tuple %s8, %s9
  %s11 = sld [smem:[#allocation0]]
  $region85: #{tpu_custom_call.1} parent=0
    _
  %s13 = ssub.s32 1, %s11
  %s14 = scalar_select 0, %s13, %s11
  $region1: #{tpu_custom_call.1} parent=0
    #allocation3 [shape = 'u8[65536]{0}', space=vmem, size = 0x10000, scoped, tag = 'input window, operand 0']
    #allocation4 [shape = 's32[2]{0}', space=sflag, size = 0x8, scoped, tag = 'scoped memory for tpu_custom_call.1']
    #allocation5 [shape = 's32[2]{0}', space=sflag, size = 0x8, scoped, tag = 'scoped memory for tpu_custom_call.1']
    #allocation6 [shape = 'u8[32768]{0}', space=vmem, size = 0x8000, scoped, tag = 'input window, operand 1']
    #allocation7 [shape = 's32[2]{0}', space=sflag, size = 0x8, scoped, tag = 'scoped memory for tpu_custom_call.1']
    #allocation8 [shape = 'u8[65536]{0}', space=vmem, size = 0x10000, scoped, tag = 'output window, operand 0']
    #allocation9 [shape = 'u8[1024]{0}', space=vmem, size = 0x400, scoped, tag = 'output window, operand 1']
    #allocation10 [shape = 's32[2]{0}', space=sflag, size = 0x8, scoped, tag = 'scoped memory for tpu_custom_call.1']
    %15 = vsyncpa [#allocation4], 0
    %s16 = scalar_lea.sflag [#allocation4], 1
    %17 = vsyncpa %s16, 0
    %18 = vsyncpa [#allocation7], 0
    %s19 = scalar_lea.sflag [#allocation7], 1
    %20 = vsyncpa %s19, 0
    %21 = vsyncpa [#allocation5], 0
    %s22 = scalar_lea.sflag [#allocation5], 1
    %23 = vsyncpa %s22, 0
    %24 = vsyncpa [#allocation10], 0
    %s25 = scalar_lea.sflag [#allocation10], 1
    %26 = vsyncpa %s25, 0
    loop: start=0, step=1, limit=6
    $region2: #{tpu_custom_call.1} parent=1 // loop_pre_header
      _
    $region3: #{tpu_custom_call.1} parent=1 // loop_header
      %s28 = sphi 0, %s32
      %p29 = scmp.ge.s32.totalorder %s28, 6
      %s35 = sphi 0, %s47
      %s36 = sphi 0, %s43
      %s37 = sphi 0, %s35
      %s38 = sphi 0, %s36
      %s39 = sphi 0, %s37
      %s40 = sphi 0, %s38
      %s52 = sphi 0, %s54
      %s55 = sphi 0, %s52
      %s56 = sphi 0, %s55
      %s72 = sphi 0, %s56
      %s78 = sphi 0, %s80
      %s81 = sphi 0, %s78
      %s82 = sphi 0, %s81
      %s98 = sphi 0, %s82
      %s102 = sphi 0, %s102
      %s104 = sphi 0, %s102
      %s105 = sphi 0, %s104
      %s119 = sphi 0, %s105
      %s123 = sphi 0, %s123
      %s125 = sphi 0, %s123
      %s126 = sphi 0, %s125
      %s140 = sphi 0, %s126
      %s144 = sphi 0, %s144
      %s146 = sphi 0, %s144
      %s147 = sphi 0, %s146
      %s161 = sphi 0, %s147
      %s165 = sphi 0, %s165
      %s167 = sphi 0, %s165
      %s168 = sphi 0, %s167
      %s182 = sphi 0, %s168
      %s188 = sphi 0, %s190
      %s191 = sphi 0, %s188
      %s192 = sphi 0, %s191
      %s208 = sphi 0, %s192
      %s212 = sphi 0, %s212
      %s214 = sphi 0, %s212
      %s215 = sphi 0, %s214
      %s229 = sphi 0, %s215
      %s237 = sphi 0, %s239
      %s240 = sphi 0, %s237
      %s241 = sphi 0, %s240
      %s257 = sphi 0, %s241
      %s263 = sphi 0, %s265
      %s266 = sphi 0, %s263
      %s267 = sphi 0, %s266
      %s283 = sphi 0, %s267
    $region4: #{tpu_custom_call.1} parent=1 // loop_header_branch
      %31 = sbr.rel (%p29) target = $region8
    $region5: #{tpu_custom_call.1} parent=1 // loop_body
      %s33 = ssub.s32 %s28, 1
      %s34 = ssub.s32 %s28, 2
      %s41 = sadd.s32 1, %s36
      %p42 = scmp.ge.s32.totalorder %s41, 2
      %s43 = scalar_select %p42, 0, %s41
      %s44 = sadd.s32 1, %s35
      %s45 = scalar_select %p42, %s44, %s35
      %p46 = scmp.ge.s32.totalorder %s45, 2
      %s47 = scalar_select %p46, 0, %s45
      %s48 = ssub.s32 %s35, %s47
      %s49 = ssub.s32 %s36, %s43
      %s50 = sor.u32 %s48, %s49
      %p51 = scmp.eq.s32.totalorder %s50, 0
      %s53 = sadd.s32 %s52, 1
      %s54 = scalar_select %p51, %s52, %s53
      %p57 = pneg %p51
      %p58 = scmp.eq.s32.totalorder %s28, 3
      %p59 = por %p57, %p58
      %p60 = scmp.ne.s32.totalorder %s52, %s55
      %p61 = scmp.eq.s32.totalorder %s28, 0
      %p62 = por %p60, %p61
      %p63 = scmp.ne.s32.totalorder %s52, %s55
      %p64 = scmp.eq.s32.totalorder %s33, 3
      %p65 = por %p63, %p64
      %p66 = scmp.ne.s32.totalorder %s55, %s56
      %p67 = scmp.eq.s32.totalorder %s33, 0
      %p68 = por %p66, %p67
      %p69 = scmp.ne.s32.totalorder %s55, %s56
      %p70 = scmp.eq.s32.totalorder %s34, 3
      %p71 = por %p69, %p70
      %p73 = scmp.ne.s32.totalorder %s56, %s72
      %p74 = scmp.eq.s32.totalorder %s34, 0
      %p75 = por %p73, %p74
      %s76 = ssub.s32 %s35, %s47
      %p77 = scmp.eq.s32.totalorder %s76, 0
      %s79 = sadd.s32 %s78, 1
      %s80 = scalar_select %p77, %s78, %s79
      %p83 = pneg %p77
      %p84 = scmp.eq.s32.totalorder %s28, 3
      %p85 = por %p83, %p84
      %p86 = scmp.ne.s32.totalorder %s78, %s81
      %p87 = scmp.eq.s32.totalorder %s28, 0
      %p88 = por %p86, %p87
      %p89 = scmp.ne.s32.totalorder %s78, %s81
      %p90 = scmp.eq.s32.totalorder %s33, 3
      %p91 = por %p89, %p90
      %p92 = scmp.ne.s32.totalorder %s81, %s82
      %p93 = scmp.eq.s32.totalorder %s33, 0
      %p94 = por %p92, %p93
      %p95 = scmp.ne.s32.totalorder %s81, %s82
      %p96 = scmp.eq.s32.totalorder %s34, 3
      %p97 = por %p95, %p96
      %p99 = scmp.ne.s32.totalorder %s82, %s98
      %p100 = scmp.eq.s32.totalorder %s34, 0
      %p101 = por %p99, %p100
      %s103 = sadd.s32 %s102, 1
      %p106 = scmp.eq.s32.totalorder %s28, 3
      %p107 = scmp.ne.s32.totalorder %s102, %s104
      %p108 = scmp.eq.s32.totalorder %s28, 0
      %p109 = por %p107, %p108
      %p110 = scmp.ne.s32.totalorder %s102, %s104
      %p111 = scmp.eq.s32.totalorder %s33, 3
      %p112 = por %p110, %p111
      %p113 = scmp.ne.s32.totalorder %s104, %s105
      %p114 = scmp.eq.s32.totalorder %s33, 0
      %p115 = por %p113, %p114
      %p116 = scmp.ne.s32.totalorder %s104, %s105
      %p117 = scmp.eq.s32.totalorder %s34, 3
      %p118 = por %p116, %p117
      %p120 = scmp.ne.s32.totalorder %s105, %s119
      %p121 = scmp.eq.s32.totalorder %s34, 0
      %p122 = por %p120, %p121
      %s124 = sadd.s32 %s123, 1
      %p127 = scmp.eq.s32.totalorder %s28, 3
      %p128 = scmp.ne.s32.totalorder %s123, %s125
      %p129 = scmp.eq.s32.totalorder %s28, 0
      %p130 = por %p128, %p129
      %p131 = scmp.ne.s32.totalorder %s123, %s125
      %p132 = scmp.eq.s32.totalorder %s33, 3
      %p133 = por %p131, %p132
      %p134 = scmp.ne.s32.totalorder %s125, %s126
      %p135 = scmp.eq.s32.totalorder %s33, 0
      %p136 = por %p134, %p135
      %p137 = scmp.ne.s32.totalorder %s125, %s126
      %p138 = scmp.eq.s32.totalorder %s34, 3
      %p139 = por %p137, %p138
      %p141 = scmp.ne.s32.totalorder %s126, %s140
      %p142 = scmp.eq.s32.totalorder %s34, 0
      %p143 = por %p141, %p142
      %s145 = sadd.s32 %s144, 1
      %p148 = scmp.eq.s32.totalorder %s28, 3
      %p149 = scmp.ne.s32.totalorder %s144, %s146
      %p150 = scmp.eq.s32.totalorder %s28, 0
      %p151 = por %p149, %p150
      %p152 = scmp.ne.s32.totalorder %s144, %s146
      %p153 = scmp.eq.s32.totalorder %s33, 3
      %p154 = por %p152, %p153
      %p155 = scmp.ne.s32.totalorder %s146, %s147
      %p156 = scmp.eq.s32.totalorder %s33, 0
      %p157 = por %p155, %p156
      %p158 = scmp.ne.s32.totalorder %s146, %s147
      %p159 = scmp.eq.s32.totalorder %s34, 3
      %p160 = por %p158, %p159
      %p162 = scmp.ne.s32.totalorder %s147, %s161
      %p163 = scmp.eq.s32.totalorder %s34, 0
      %p164 = por %p162, %p163
      %s166 = sadd.s32 %s165, 1
      %p169 = scmp.eq.s32.totalorder %s28, 3
      %p170 = scmp.ne.s32.totalorder %s165, %s167
      %p171 = scmp.eq.s32.totalorder %s28, 0
      %p172 = por %p170, %p171
      %p173 = scmp.ne.s32.totalorder %s165, %s167
      %p174 = scmp.eq.s32.totalorder %s33, 3
      %p175 = por %p173, %p174
      %p176 = scmp.ne.s32.totalorder %s167, %s168
      %p177 = scmp.eq.s32.totalorder %s33, 0
      %p178 = por %p176, %p177
      %p179 = scmp.ne.s32.totalorder %s167, %s168
      %p180 = scmp.eq.s32.totalorder %s34, 3
      %p181 = por %p179, %p180
      %p183 = scmp.ne.s32.totalorder %s168, %s182
      %p184 = scmp.eq.s32.totalorder %s34, 0
      %p185 = por %p183, %p184
      %s186 = ssub.s32 %s36, %s43
      %p187 = scmp.eq.s32.totalorder %s186, 0
      %s189 = sadd.s32 %s188, 1
      %s190 = scalar_select %p187, %s188, %s189
      %p193 = pneg %p187
      %p194 = scmp.eq.s32.totalorder %s28, 3
      %p195 = por %p193, %p194
      %p196 = scmp.ne.s32.totalorder %s188, %s191
      %p197 = scmp.eq.s32.totalorder %s28, 0
      %p198 = por %p196, %p197
      %p199 = scmp.ne.s32.totalorder %s188, %s191
      %p200 = scmp.eq.s32.totalorder %s33, 3
      %p201 = por %p199, %p200
      %p202 = scmp.ne.s32.totalorder %s191, %s192
      %p203 = scmp.eq.s32.totalorder %s33, 0
      %p204 = por %p202, %p203
      %p205 = scmp.ne.s32.totalorder %s191, %s192
      %p206 = scmp.eq.s32.totalorder %s34, 3
      %p207 = por %p205, %p206
      %p209 = scmp.ne.s32.totalorder %s192, %s208
      %p210 = scmp.eq.s32.totalorder %s34, 0
      %p211 = por %p209, %p210
      %s213 = sadd.s32 %s212, 1
      %p216 = scmp.eq.s32.totalorder %s28, 3
      %p217 = scmp.ne.s32.totalorder %s212, %s214
      %p218 = scmp.eq.s32.totalorder %s28, 0
      %p219 = por %p217, %p218
      %p220 = scmp.ne.s32.totalorder %s212, %s214
      %p221 = scmp.eq.s32.totalorder %s33, 3
      %p222 = por %p220, %p221
      %p223 = scmp.ne.s32.totalorder %s214, %s215
      %p224 = scmp.eq.s32.totalorder %s33, 0
      %p225 = por %p223, %p224
      %p226 = scmp.ne.s32.totalorder %s214, %s215
      %p227 = scmp.eq.s32.totalorder %s34, 3
      %p228 = por %p226, %p227
      %p230 = scmp.ne.s32.totalorder %s215, %s229
      %p231 = scmp.eq.s32.totalorder %s34, 0
      %p232 = por %p230, %p231
      %s233 = ssub.s32 %s35, %s47
      %s234 = ssub.s32 %s36, %s43
      %s235 = sor.u32 %s233, %s234
      %p236 = scmp.eq.s32.totalorder %s235, 0
      %s238 = sadd.s32 %s237, 1
      %s239 = scalar_select %p236, %s237, %s238
      %p242 = pneg %p236
      %p243 = scmp.eq.s32.totalorder %s28, 3
      %p244 = por %p242, %p243
      %p245 = scmp.ne.s32.totalorder %s237, %s240
      %p246 = scmp.eq.s32.totalorder %s28, 0
      %p247 = por %p245, %p246
      %p248 = scmp.ne.s32.totalorder %s237, %s240
      %p249 = scmp.eq.s32.totalorder %s33, 3
      %p250 = por %p248, %p249
      %p251 = scmp.ne.s32.totalorder %s240, %s241
      %p252 = scmp.eq.s32.totalorder %s33, 0
      %p253 = por %p251, %p252
      %p254 = scmp.ne.s32.totalorder %s240, %s241
      %p255 = scmp.eq.s32.totalorder %s34, 3
      %p256 = por %p254, %p255
      %p258 = scmp.ne.s32.totalorder %s241, %s257
      %p259 = scmp.eq.s32.totalorder %s34, 0
      %p260 = por %p258, %p259
      %s261 = ssub.s32 %s35, %s47
      %p262 = scmp.eq.s32.totalorder %s261, 0
      %s264 = sadd.s32 %s263, 1
      %s265 = scalar_select %p262, %s263, %s264
      %p268 = pneg %p262
      %p269 = scmp.eq.s32.totalorder %s28, 3
      %p270 = por %p268, %p269
      %p271 = scmp.ne.s32.totalorder %s263, %s266
      %p272 = scmp.eq.s32.totalorder %s28, 0
      %p273 = por %p271, %p272
      %p274 = scmp.ne.s32.totalorder %s263, %s266
      %p275 = scmp.eq.s32.totalorder %s33, 3
      %p276 = por %p274, %p275
      %p277 = scmp.ne.s32.totalorder %s266, %s267
      %p278 = scmp.eq.s32.totalorder %s33, 0
      %p279 = por %p277, %p278
      %p280 = scmp.ne.s32.totalorder %s266, %s267
      %p281 = scmp.eq.s32.totalorder %s34, 3
      %p282 = por %p280, %p281
      %p284 = scmp.ne.s32.totalorder %s267, %s283
      %p285 = scmp.eq.s32.totalorder %s34, 0
      %p286 = por %p284, %p285
      %p287 = scmp.le.s32.totalorder 1, %s28
      %p288 = scmp.lt.s32.totalorder %s28, 5
      %p289 = pnand %p287, %p288
      %p290 = pneg %p289
      // Predicated region
      $region9: #{tpu_custom_call.1} parent=5 // pred_check
        _
      $region10: #{tpu_custom_call.1} parent=5 // pred_check_branch
        %292 = sbr.rel (%p289) target = $region12
      $region11: #{tpu_custom_call.1} parent=5 // pred_region
        %s293 = ssub.s32 %s28, 1
        // Predicated region
        $region13: #{tpu_custom_call.1} parent=11 // pred_check
          %p294 = pneg %p115
        $region14: #{tpu_custom_call.1} parent=11 // pred_check_branch
          %296 = sbr.rel (%p294) target = $region16
        $region15: #{tpu_custom_call.1} parent=11 // pred_region
          _
        $region16: #{tpu_custom_call.1} parent=11 // pred_fallthru
          _
        // Predicated region
        $region17: #{tpu_custom_call.1} parent=11 // pred_check
          %p297 = pneg %p136
        $region18: #{tpu_custom_call.1} parent=11 // pred_check_branch
          %299 = sbr.rel (%p297) target = $region20
        $region19: #{tpu_custom_call.1} parent=11 // pred_region
          _
        $region20: #{tpu_custom_call.1} parent=11 // pred_fallthru
          _
        // Predicated region
        $region21: #{tpu_custom_call.1} parent=11 // pred_check
          %p300 = pneg %p157
        $region22: #{tpu_custom_call.1} parent=11 // pred_check_branch
          %302 = sbr.rel (%p300) target = $region24
        $region23: #{tpu_custom_call.1} parent=11 // pred_region
          _
        $region24: #{tpu_custom_call.1} parent=11 // pred_fallthru
          _
        // Predicated region
        $region25: #{tpu_custom_call.1} parent=11 // pred_check
          %p303 = pneg %p178
        $region26: #{tpu_custom_call.1} parent=11 // pred_check_branch
          %305 = sbr.rel (%p303) target = $region28
        $region27: #{tpu_custom_call.1} parent=11 // pred_region
          _
        $region28: #{tpu_custom_call.1} parent=11 // pred_fallthru
          _
        // Predicated region
        $region29: #{tpu_custom_call.1} parent=11 // pred_check
          %p306 = pneg %p225
        $region30: #{tpu_custom_call.1} parent=11 // pred_check_branch
          %308 = sbr.rel (%p306) target = $region32
        $region31: #{tpu_custom_call.1} parent=11 // pred_region
          _
        $region32: #{tpu_custom_call.1} parent=11 // pred_fallthru
          _
      $region12: #{tpu_custom_call.1} parent=5 // pred_fallthru
        _
      %p309 = scmp.lt.s32.totalorder %s28, 4
      // Predicated region
      $region33: #{tpu_custom_call.1} parent=5 // pred_check
        %p310 = pneg %p309
      $region34: #{tpu_custom_call.1} parent=5 // pred_check_branch
        %312 = sbr.rel (%p310) target = $region36
      $region35: #{tpu_custom_call.1} parent=5 // pred_region
        // Predicated region
        $region37: #{tpu_custom_call.1} parent=35 // pred_check
          %p313 = pneg %p62
        $region38: #{tpu_custom_call.1} parent=35 // pred_check_branch
          %315 = sbr.rel (%p313) target = $region40
        $region39: #{tpu_custom_call.1} parent=35 // pred_region
          %s316 = sand.u32 %s52, 1
          %s317 = scalar_lea.sflag [#allocation4], %s316
          %s318 = sand.u32 %s52, 1
          %s319 = smul.addr %s318, 64
          %s320 = scalar_lea.vmem [#allocation3], %s319
          %s321 = smul.u32 8, %s36
          %s323 = ssub.s32 1024, 1024
          %324 = vsyncadd %s317, %s323
          %s325 = smul.addr %s321, 2
          %s326 = smul.addr %s35, 32
          %s327 = sadd.s32 %s325, %s326
          %s328 = smul.addr %s327, 64
          %s329 = scalar_lea.hbm %s0, %s328
          %s330 = sshll.u32 %s320, 4
          %s331 = int_to_ptr.vmem [resolvable:$true] %s330
          %336 = dma.hbm_to_vmem [thread:$0]  %s329, 1024, %s331, %s317, 64, 64, 4
        $region40: #{tpu_custom_call.1} parent=35 // pred_fallthru
          _
        // Predicated region
        $region41: #{tpu_custom_call.1} parent=35 // pred_check
          %p337 = pneg %p88
        $region42: #{tpu_custom_call.1} parent=35 // pred_check_branch
          %339 = sbr.rel (%p337) target = $region44
        $region43: #{tpu_custom_call.1} parent=35 // pred_region
          %s340 = sand.u32 %s78, 1
          %s341 = scalar_lea.sflag [#allocation7], %s340
          %s342 = sand.u32 %s78, 1
          %s343 = smul.addr %s342, 32
          %s344 = scalar_lea.vmem [#allocation6], %s343
          %s346 = ssub.s32 512, 512
          %347 = vsyncadd %s341, %s346
          %s348 = smul.addr %s35, 8
          %s349 = smul.addr %s348, 64
          %s350 = scalar_lea.hbm %s1, %s349
          %s351 = sshll.u32 %s344, 4
          %s352 = int_to_ptr.vmem [resolvable:$true] %s351
          %357 = dma.hbm_to_vmem [thread:$0]  %s350, 512, %s352, %s341, 64, 64, 4
        $region44: #{tpu_custom_call.1} parent=35 // pred_fallthru
          _
        // Predicated region
        $region45: #{tpu_custom_call.1} parent=35 // pred_check
          %p358 = pneg %p198
        $region46: #{tpu_custom_call.1} parent=35 // pred_check_branch
          %360 = sbr.rel (%p358) target = $region48
        $region47: #{tpu_custom_call.1} parent=35 // pred_region
          %p361 = scmp.lt.s32.totalorder %s36, 1
          %s362 = scalar_select %p361, %s36, 1
          %s363 = smul.addr %s362, 4
          %s364 = scalar_lea.vmem %s6, %s363
        $region48: #{tpu_custom_call.1} parent=35 // pred_fallthru
          _
      $region36: #{tpu_custom_call.1} parent=5 // pred_fallthru
        _
      %p365 = scmp.le.s32.totalorder 1, %s28
      %p366 = scmp.lt.s32.totalorder %s28, 5
      %p367 = pnand %p365, %p366
      %p368 = pneg %p367
      // Predicated region
      $region49: #{tpu_custom_call.1} parent=5 // pred_check
        _
      $region50: #{tpu_custom_call.1} parent=5 // pred_check_branch
        %370 = sbr.rel (%p367) target = $region52
      $region51: #{tpu_custom_call.1} parent=5 // pred_region
        %s371 = ssub.s32 %s28, 1
        %s372 = sand.u32 %s55, 1
        %s373 = scalar_lea.sflag [#allocation4], %s372
        %s374 = sand.u32 %s55, 1
        %s375 = smul.addr %s374, 64
        %s376 = scalar_lea.vmem [#allocation3], %s375
        // Predicated region
        $region53: #{tpu_custom_call.1} parent=51 // pred_check
          %p377 = pneg %p68
        $region54: #{tpu_custom_call.1} parent=51 // pred_check_branch
          %379 = sbr.rel (%p377) target = $region56
        $region55: #{tpu_custom_call.1} parent=51 // pred_region
          %380 = dma.done %s373, 1024
        $region56: #{tpu_custom_call.1} parent=51 // pred_fallthru
          _
        %s381 = sand.u32 %s81, 1
        %s382 = scalar_lea.sflag [#allocation7], %s381
        %s383 = sand.u32 %s81, 1
        %s384 = smul.addr %s383, 32
        %s385 = scalar_lea.vmem [#allocation6], %s384
        // Predicated region
        $region57: #{tpu_custom_call.1} parent=51 // pred_check
          %p386 = pneg %p94
        $region58: #{tpu_custom_call.1} parent=51 // pred_check_branch
          %388 = sbr.rel (%p386) target = $region60
        $region59: #{tpu_custom_call.1} parent=51 // pred_region
          %389 = dma.done %s382, 512
        $region60: #{tpu_custom_call.1} parent=51 // pred_fallthru
          _
        %s390 = sand.u32 %s55, 1
        %s391 = scalar_lea.sflag [#allocation4], %s390
        %s392 = sand.u32 %s55, 1
        %s393 = smul.addr %s392, 64
        %s394 = scalar_lea.vmem [#allocation3], %s393
        %p395 = pneg %p68
        %p396 = pneg %p65
        %s397 = sand.u32 %s81, 1
        %s398 = scalar_lea.sflag [#allocation7], %s397
        %s399 = sand.u32 %s81, 1
        %s400 = smul.addr %s399, 32
        %s401 = scalar_lea.vmem [#allocation6], %s400
        %p402 = pneg %p94
        %p403 = pneg %p91
        %p404 = pneg %p115
        %p405 = pneg %p112
        %p406 = pneg %p136
        %p407 = pneg %p133
        %p408 = pneg %p157
        %p409 = pneg %p154
        %p410 = pneg %p178
        %p411 = pneg %p175
        %p412 = scmp.lt.s32.totalorder %s38, 1
        %s413 = scalar_select %p412, %s38, 1
        %s414 = smul.addr %s413, 4
        %s415 = scalar_lea.vmem %s6, %s414
        %p416 = pneg %p204
        %p417 = pneg %p201
        %p418 = pneg %p225
        %p419 = pneg %p222
        %p420 = pneg %p253
        %p421 = pneg %p250
        %s422 = sand.u32 %s240, 1
        %s423 = scalar_lea.sflag [#allocation5], %s422
        %s424 = sand.u32 %s240, 1
        %s425 = smul.addr %s424, 64
        %s426 = scalar_lea.vmem [#allocation8], %s425
        %p427 = pneg %p279
        %p428 = pneg %p276
        %s429 = sand.u32 %s266, 1
        %s430 = scalar_lea.sflag [#allocation10], %s429
        %s431 = sand.u32 %s266, 1
        %s432 = scalar_lea.vmem [#allocation9], %s431
        %s433 = smul.u32 8, %s38
        %p434 = scmp.lt.s32.totalorder %s38, 1
        %s435 = scalar_select %p434, %s38, 1
        %s436 = smul.addr %s435, 4
        %s437 = scalar_lea.vmem %s6, %s436
        %s438 = smul.u32 8, %s38
        %p440 = scmp.eq.s32.totalorder %s38, 0
        // Predicated region
        $region61: #{tpu_custom_call.1} parent=51 // pred_check
          %p441 = pneg %p440
        $region62: #{tpu_custom_call.1} parent=51 // pred_check_branch
          %443 = sbr.rel (%p441) target = $region64
        $region63: #{tpu_custom_call.1} parent=51 // pred_region
          %v444 = vld [vmem:[%s385] sm:$0xf]
          %v445 = vld [vmem:[%s385 + $0x4] sm:$0xf]
          %v446 = vld [vmem:[%s385 + $0x8] sm:$0xf]
          %v447 = vld [vmem:[%s385 + $0xc] sm:$0xf]
          %v448 = vld [vmem:[%s385 + $0x10] sm:$0xf]
          %v449 = vld [vmem:[%s385 + $0x14] sm:$0xf]
          %v450 = vld [vmem:[%s385 + $0x18] sm:$0xf]
          %v451 = vld [vmem:[%s385 + $0x1c] sm:$0xf]
          %v452 = vld [vmem:[%s4] sm:$0xf]
          %v453 = vld [vmem:[%s4 + $0x4] sm:$0xf]
          %v454 = vld [vmem:[%s5] sm:$0x1]
          %v456 = vlaneseq
          %v457 = vshrl.u32 %v456, 7
          %v458 = vsub.s32 0, %v457
          %v459 = vrot.slane %v454, %v458
          %v469 = vunpack.c.l.b16 %v444
          %v470 = vunpack.c.l.b16 %v445
          %v471 = vunpack.c.l.b16 %v446
          %v472 = vunpack.c.l.b16 %v447
          %v473 = vunpack.c.l.b16 %v448
          %v474 = vunpack.c.l.b16 %v449
          %v475 = vunpack.c.l.b16 %v450
          %v476 = vunpack.c.l.b16 %v451
          %v477 = vpack.c.b16 %v470, %v469
          %v478 = vpack.c.b16 %v472, %v471
          %v479 = vpack.c.b16 %v474, %v473
          %v480 = vpack.c.b16 %v476, %v475
          %v483 = vunpack.c.l.b16 %v452
          %v484 = vunpack.c.l.b16 %v453
          %v485 = vpack.c.b16 %v484, %v483
          %vm487 = vcmask 130048
          %v489 = vsel %vm487, %v477, 0
          %v492 = vsel %vm487, %v478, 0
          %v495 = vsel %vm487, %v479, 0
          %v498 = vsel %vm487, %v480, 0
          %500 = vmatprep.subr.bf16.mxu0 0
          %501 = vmatpush1.bf16.msra.mxu0 %v485
          %502 = vmatprep.subr.bf16.mxu0 0
          %503 = vmatpush1.bf16.msra.mxu0 0
          %504 = vmatprep.subr.bf16.mxu0 0
          %505 = vmatpush1.bf16.msra.mxu0 0
          %506 = vmatprep.subr.bf16.mxu0 0
          %507 = vmatpush1.bf16.msra.mxu0 0
          %508 = vmatprep.subr.bf16.mxu0 0
          %509 = vmatpush1.bf16.msra.mxu0 0
          %510 = vmatprep.subr.bf16.mxu0 0
          %511 = vmatpush1.bf16.msra.mxu0 0
          %512 = vmatprep.subr.bf16.mxu0 0
          %513 = vmatpush1.bf16.msra.mxu0 0
          %514 = vmatprep.subr.bf16.mxu0 0
          %515 = vmatpush1.bf16.msra.mxu0 0
          %516 = vmatprep.subr.bf16.mxu0 0
          %517 = vmatpush1.bf16.msra.mxu0 0
          %518 = vmatprep.subr.bf16.mxu0 0
          %519 = vmatpush1.bf16.msra.mxu0 0
          %520 = vmatprep.subr.bf16.mxu0 0
          %521 = vmatpush1.bf16.msra.mxu0 0
          %522 = vmatprep.subr.bf16.mxu0 0
          %523 = vmatpush1.bf16.msra.mxu0 0
          %524 = vmatprep.subr.bf16.mxu0 0
          %525 = vmatpush1.bf16.msra.mxu0 0
          %526 = vmatprep.subr.bf16.mxu0 0
          %527 = vmatpush1.bf16.msra.mxu0 0
          %528 = vmatprep.subr.bf16.mxu0 0
          %529 = vmatpush1.bf16.msra.mxu0 0
          %530 = vmatprep.subr.bf16.mxu0 0
          %531 = vmatpush1.bf16.msra.mxu0 0
          %532 = vmatprep.mubr.bf16.mxu0 0
          %533 = vmatmul.mubr.bf16.gmra.mrb[0].mxu0 %v489
          %v534 = vpop.f32.mrb[0].mxu0
          %v535 = vadd.f32 %v459, %v534
          %v536 = vpop.f32.mrb[0].mxu0
          %v537 = vpop.f32.mrb[0].mxu0
          %v538 = vadd.f32 %v459, %v537
          %v539 = vpop.f32.mrb[0].mxu0
          %540 = vmatprep.mubr.bf16.mxu0 0
          %541 = vmatmul.mubr.bf16.gmra.mrb[0].mxu0 %v492
          %v542 = vpop.f32.mrb[0].mxu0
          %v543 = vadd.f32 %v459, %v542
          %v544 = vpop.f32.mrb[0].mxu0
          %v545 = vpop.f32.mrb[0].mxu0
          %v546 = vadd.f32 %v459, %v545
          %v547 = vpop.f32.mrb[0].mxu0
          %548 = vmatprep.mubr.bf16.mxu0 0
          %549 = vmatmul.mubr.bf16.gmra.mrb[0].mxu0 %v495
          %v550 = vpop.f32.mrb[0].mxu0
          %v551 = vadd.f32 %v459, %v550
          %v552 = vpop.f32.mrb[0].mxu0
          %v553 = vpop.f32.mrb[0].mxu0
          %v554 = vadd.f32 %v459, %v553
          %v555 = vpop.f32.mrb[0].mxu0
          %556 = vmatprep.mubr.bf16.mxu0 0
          %557 = vmatmul.mubr.bf16.gmra.mrb[0].mxu0 %v498
          %v558 = vpop.f32.mrb[0].mxu0
          %v559 = vadd.f32 %v459, %v558
          %v560 = vpop.f32.mrb[0].mxu0
          %v561 = vpop.f32.mrb[0].mxu0
          %v562 = vadd.f32 %v459, %v561
          %v563 = vpop.f32.mrb[0].mxu0
          %564 = vdwg.mxu0
          %v565 = vlaneseq
          %v566 = vand.u32 %v565, 127
          %vm567 = vcmp.lt.s32.totalorder %v566, 32
          %v568 = vadd.f32 %v535, 3.0
          %v569 = vadd.f32 %v538, 3.0
          %v570 = vadd.f32 %v543, 3.0
          %v571 = vadd.f32 %v546, 3.0
          %v572 = vadd.f32 %v551, 3.0
          %v573 = vadd.f32 %v554, 3.0
          %v574 = vadd.f32 %v559, 3.0
          %v575 = vadd.f32 %v562, 3.0
          %v576 = vmax.f32 %v568, 0.0
          %v577 = vmax.f32 %v569, 0.0
          %v578 = vmax.f32 %v570, 0.0
          %v579 = vmax.f32 %v571, 0.0
          %v580 = vmax.f32 %v572, 0.0
          %v581 = vmax.f32 %v573, 0.0
          %v582 = vmax.f32 %v574, 0.0
          %v583 = vmax.f32 %v575, 0.0
          %v584 = vmin.f32 %v576, 6.0
          %v585 = vmin.f32 %v577, 6.0
          %v586 = vmin.f32 %v578, 6.0
          %v587 = vmin.f32 %v579, 6.0
          %v588 = vmin.f32 %v580, 6.0
          %v589 = vmin.f32 %v581, 6.0
          %v590 = vmin.f32 %v582, 6.0
          %v591 = vmin.f32 %v583, 6.0
          %v592 = vmul.f32 %v584, 0.16666667
          %v593 = vmul.f32 %v585, 0.16666667
          %v594 = vmul.f32 %v586, 0.16666667
          %v595 = vmul.f32 %v587, 0.16666667
          %v596 = vmul.f32 %v588, 0.16666667
          %v597 = vmul.f32 %v589, 0.16666667
          %v598 = vmul.f32 %v590, 0.16666667
          %v599 = vmul.f32 %v591, 0.16666667
          %v600 = vsel %vm567, %v592, %v535
          %v601 = vsel %vm567, %v593, %v538
          %v602 = vsel %vm567, %v594, %v543
          %v603 = vsel %vm567, %v595, %v546
          %v604 = vsel %vm567, %v596, %v551
          %v605 = vsel %vm567, %v597, %v554
          %v606 = vsel %vm567, %v598, %v559
          %v607 = vsel %vm567, %v599, %v562
          %v608 = vpack.c.bf16 %v600, %v600
          %v609 = vpack.c.bf16 %v601, %v601
          %v610 = vpack.c.bf16 %v602, %v602
          %v611 = vpack.c.bf16 %v603, %v603
          %v612 = vpack.c.bf16 %v604, %v604
          %v613 = vpack.c.bf16 %v605, %v605
          %v614 = vpack.c.bf16 %v606, %v606
          %v615 = vpack.c.bf16 %v607, %v607
          %v616 = vld [vmem:[%s7] sm:$0xf]
          %v617 = vld [vmem:[%s7 + $0x4] sm:$0xf]
          %618 = vxpose.xlu0.c.b16.start [1/8] %v608, 128
          %619 = vxpose.xlu0.c.b16.cont [2/8] 0, 128
          %620 = vxpose.xlu0.c.b16.cont [3/8] 0, 128
          %621 = vxpose.xlu0.c.b16.cont [4/8] 0, 128
          %622 = vxpose.xlu0.c.b16.cont [5/8] 0, 128
          %623 = vxpose.xlu0.c.b16.cont [6/8] 0, 128
          %624 = vxpose.xlu0.c.b16.cont [7/8] 0, 128
          %625 = vxpose.xlu0.c.b16.end [8/8] 0, 128
          %v626 = vpop.trf.xlu0
          %v627 = vpop.trf.xlu0
          %v628 = vpop.trf.xlu0
          %v629 = vpop.trf.xlu0
          %v630 = vpop.trf.xlu0
          %v631 = vpop.trf.xlu0
          %v632 = vpop.trf.xlu0
          %v633 = vpop.trf.xlu0
          %634 = vxpose.xlu0.c.b16.start [1/8] %v609, 128
          %635 = vxpose.xlu0.c.b16.cont [2/8] 0, 128
          %636 = vxpose.xlu0.c.b16.cont [3/8] 0, 128
          %637 = vxpose.xlu0.c.b16.cont [4/8] 0, 128
          %638 = vxpose.xlu0.c.b16.cont [5/8] 0, 128
          %639 = vxpose.xlu0.c.b16.cont [6/8] 0, 128
          %640 = vxpose.xlu0.c.b16.cont [7/8] 0, 128
          %641 = vxpose.xlu0.c.b16.end [8/8] 0, 128
          %v642 = vpop.trf.xlu0
          %v643 = vpop.trf.xlu0
          %v644 = vpop.trf.xlu0
          %v645 = vpop.trf.xlu0
          %v646 = vpop.trf.xlu0
          %v647 = vpop.trf.xlu0
          %v648 = vpop.trf.xlu0
          %v649 = vpop.trf.xlu0
          %650 = vxpose.xlu0.c.b16.start [1/8] %v610, 128
          %651 = vxpose.xlu0.c.b16.cont [2/8] 0, 128
          %652 = vxpose.xlu0.c.b16.cont [3/8] 0, 128
          %653 = vxpose.xlu0.c.b16.cont [4/8] 0, 128
          %654 = vxpose.xlu0.c.b16.cont [5/8] 0, 128
          %655 = vxpose.xlu0.c.b16.cont [6/8] 0, 128
          %656 = vxpose.xlu0.c.b16.cont [7/8] 0, 128
          %657 = vxpose.xlu0.c.b16.end [8/8] 0, 128
          %v658 = vpop.trf.xlu0
          %v659 = vpop.trf.xlu0
          %v660 = vpop.trf.xlu0
          %v661 = vpop.trf.xlu0
          %v662 = vpop.trf.xlu0
          %v663 = vpop.trf.xlu0
          %v664 = vpop.trf.xlu0
          %v665 = vpop.trf.xlu0
          %666 = vxpose.xlu0.c.b16.start [1/8] %v611, 128
          %667 = vxpose.xlu0.c.b16.cont [2/8] 0, 128
          %668 = vxpose.xlu0.c.b16.cont [3/8] 0, 128
          %669 = vxpose.xlu0.c.b16.cont [4/8] 0, 128
          %670 = vxpose.xlu0.c.b16.cont [5/8] 0, 128
          %671 = vxpose.xlu0.c.b16.cont [6/8] 0, 128
          %672 = vxpose.xlu0.c.b16.cont [7/8] 0, 128
          %673 = vxpose.xlu0.c.b16.end [8/8] 0, 128
          %v674 = vpop.trf.xlu0
          %v675 = vpop.trf.xlu0
          %v676 = vpop.trf.xlu0
          %v677 = vpop.trf.xlu0
          %v678 = vpop.trf.xlu0
          %v679 = vpop.trf.xlu0
          %v680 = vpop.trf.xlu0
          %v681 = vpop.trf.xlu0
          %682 = vxpose.xlu0.c.b16.start [1/8] %v612, 128
          %683 = vxpose.xlu0.c.b16.cont [2/8] 0, 128
          %684 = vxpose.xlu0.c.b16.cont [3/8] 0, 128
          %685 = vxpose.xlu0.c.b16.cont [4/8] 0, 128
          %686 = vxpose.xlu0.c.b16.cont [5/8] 0, 128
          %687 = vxpose.xlu0.c.b16.cont [6/8] 0, 128
          %688 = vxpose.xlu0.c.b16.cont [7/8] 0, 128
          %689 = vxpose.xlu0.c.b16.end [8/8] 0, 128
          %v690 = vpop.trf.xlu0
          %v691 = vpop.trf.xlu0
          %v692 = vpop.trf.xlu0
          %v693 = vpop.trf.xlu0
          %v694 = vpop.trf.xlu0
          %v695 = vpop.trf.xlu0
          %v696 = vpop.trf.xlu0
          %v697 = vpop.trf.xlu0
          %698 = vxpose.xlu0.c.b16.start [1/8] %v613, 128
          %699 = vxpose.xlu0.c.b16.cont [2/8] 0, 128
          %700 = vxpose.xlu0.c.b16.cont [3/8] 0, 128
          %701 = vxpose.xlu0.c.b16.cont [4/8] 0, 128
          %702 = vxpose.xlu0.c.b16.cont [5/8] 0, 128
          %703 = vxpose.xlu0.c.b16.cont [6/8] 0, 128
          %704 = vxpose.xlu0.c.b16.cont [7/8] 0, 128
          %705 = vxpose.xlu0.c.b16.end [8/8] 0, 128
          %v706 = vpop.trf.xlu0
          %v707 = vpop.trf.xlu0
          %v708 = vpop.trf.xlu0
          %v709 = vpop.trf.xlu0
          %v710 = vpop.trf.xlu0
          %v711 = vpop.trf.xlu0
          %v712 = vpop.trf.xlu0
          %v713 = vpop.trf.xlu0
          %714 = vxpose.xlu0.c.b16.start [1/8] %v614, 128
          %715 = vxpose.xlu0.c.b16.cont [2/8] 0, 128
          %716 = vxpose.xlu0.c.b16.cont [3/8] 0, 128
          %717 = vxpose.xlu0.c.b16.cont [4/8] 0, 128
          %718 = vxpose.xlu0.c.b16.cont [5/8] 0, 128
          %719 = vxpose.xlu0.c.b16.cont [6/8] 0, 128
          %720 = vxpose.xlu0.c.b16.cont [7/8] 0, 128
          %721 = vxpose.xlu0.c.b16.end [8/8] 0, 128
          %v722 = vpop.trf.xlu0
          %v723 = vpop.trf.xlu0
          %v724 = vpop.trf.xlu0
          %v725 = vpop.trf.xlu0
          %v726 = vpop.trf.xlu0
          %v727 = vpop.trf.xlu0
          %v728 = vpop.trf.xlu0
          %v729 = vpop.trf.xlu0
          %730 = vxpose.xlu0.c.b16.start [1/8] %v615, 128
          %731 = vxpose.xlu0.c.b16.cont [2/8] 0, 128
          %732 = vxpose.xlu0.c.b16.cont [3/8] 0, 128
          %733 = vxpose.xlu0.c.b16.cont [4/8] 0, 128
          %734 = vxpose.xlu0.c.b16.cont [5/8] 0, 128
          %735 = vxpose.xlu0.c.b16.cont [6/8] 0, 128
          %736 = vxpose.xlu0.c.b16.cont [7/8] 0, 128
          %737 = vxpose.xlu0.c.b16.end [8/8] 0, 128
          %v738 = vpop.trf.xlu0
          %v739 = vpop.trf.xlu0
          %v740 = vpop.trf.xlu0
          %v741 = vpop.trf.xlu0
          %v742 = vpop.trf.xlu0
          %v743 = vpop.trf.xlu0
          %v744 = vpop.trf.xlu0
          %v745 = vpop.trf.xlu0
          %v748 = vunpack.c.l.b16 %v616
          %v749 = vunpack.c.l.b16 %v617
          %v750 = vpack.c.b16 %v749, %v748
          %vm751 = vcmask 64512
          %v753 = vsel %vm751, %v626, 0
          %v756 = vsel %vm751, %v627, 0
          %v759 = vsel %vm751, %v628, 0
          %v762 = vsel %vm751, %v629, 0
          %v765 = vsel %vm751, %v642, 0
          %v768 = vsel %vm751, %v643, 0
          %v771 = vsel %vm751, %v644, 0
          %v774 = vsel %vm751, %v645, 0
          %v777 = vsel %vm751, %v658, 0
          %v780 = vsel %vm751, %v659, 0
          %v783 = vsel %vm751, %v660, 0
          %v786 = vsel %vm751, %v661, 0
          %v789 = vsel %vm751, %v674, 0
          %v792 = vsel %vm751, %v675, 0
          %v795 = vsel %vm751, %v676, 0
          %v798 = vsel %vm751, %v677, 0
          %v801 = vsel %vm751, %v690, 0
          %v804 = vsel %vm751, %v691, 0
          %v807 = vsel %vm751, %v692, 0
          %v810 = vsel %vm751, %v693, 0
          %v813 = vsel %vm751, %v706, 0
          %v816 = vsel %vm751, %v707, 0
          %v819 = vsel %vm751, %v708, 0
          %v822 = vsel %vm751, %v709, 0
          %v825 = vsel %vm751, %v722, 0
          %v828 = vsel %vm751, %v723, 0
          %v831 = vsel %vm751, %v724, 0
          %v834 = vsel %vm751, %v725, 0
          %v837 = vsel %vm751, %v738, 0
          %v840 = vsel %vm751, %v739, 0
          %v843 = vsel %vm751, %v740, 0
          %v846 = vsel %vm751, %v741, 0
          %v849 = vsel %vm751, %v750, 0
          %851 = vmatprep.subr.bf16.mxu0 0
          %852 = vmatpush1.bf16.xpose.msra.mxu0 %v849
          %853 = vmatprep.subr.bf16.mxu0 0
          %854 = vmatpush1.bf16.xpose.msra.mxu0 0
          %855 = vmatprep.subr.bf16.mxu0 0
          %856 = vmatpush1.bf16.xpose.msra.mxu0 0
          %857 = vmatprep.subr.bf16.mxu0 0
          %858 = vmatpush1.bf16.xpose.msra.mxu0 0
          %859 = vmatprep.subr.bf16.mxu0 0
          %860 = vmatpush1.bf16.xpose.msra.mxu0 0
          %861 = vmatprep.subr.bf16.mxu0 0
          %862 = vmatpush1.bf16.xpose.msra.mxu0 0
          %863 = vmatprep.subr.bf16.mxu0 0
          %864 = vmatpush1.bf16.xpose.msra.mxu0 0
          %865 = vmatprep.subr.bf16.mxu0 0
          %866 = vmatpush1.bf16.xpose.msra.mxu0 0
          %867 = vmatprep.subr.bf16.mxu0 0
          %868 = vmatpush1.bf16.xpose.msra.mxu0 0
          %869 = vmatprep.subr.bf16.mxu0 0
          %870 = vmatpush1.bf16.xpose.msra.mxu0 0
          %871 = vmatprep.subr.bf16.mxu0 0
          %872 = vmatpush1.bf16.xpose.msra.mxu0 0
          %873 = vmatprep.subr.bf16.mxu0 0
          %874 = vmatpush1.bf16.xpose.msra.mxu0 0
          %875 = vmatprep.subr.bf16.mxu0 0
          %876 = vmatpush1.bf16.xpose.msra.mxu0 0
          %877 = vmatprep.subr.bf16.mxu0 0
          %878 = vmatpush1.bf16.xpose.msra.mxu0 0
          %879 = vmatprep.subr.bf16.mxu0 0
          %880 = vmatpush1.bf16.xpose.msra.mxu0 0
          %881 = vmatprep.subr.bf16.mxu0 0
          %882 = vmatpush1.bf16.xpose.msra.mxu0 0
          %883 = vmatprep.mubr.bf16.mxu0 0
          %884 = vmatmul.mubr.bf16.gmra.mrb[0].mxu0 %v753
          %v885 = vpop.f32.mrb[0].mxu0
          %v886 = vadd.f32 0.0, %v885
          %v887 = vpop.f32.mrb[0].mxu0
          %v888 = vpop.f32.mrb[0].mxu0
          %v889 = vadd.f32 0.0, %v888
          %v890 = vpop.f32.mrb[0].mxu0
          %891 = vmatprep.mubr.bf16.mxu0 0
          %892 = vmatmul.mubr.bf16.gmra.mrb[0].mxu0 %v756
          %v893 = vpop.f32.mrb[0].mxu0
          %v894 = vadd.f32 0.0, %v893
          %v895 = vpop.f32.mrb[0].mxu0
          %v896 = vpop.f32.mrb[0].mxu0
          %v897 = vadd.f32 0.0, %v896
          %v898 = vpop.f32.mrb[0].mxu0
          %899 = vmatprep.mubr.bf16.mxu0 0
          %900 = vmatmul.mubr.bf16.gmra.mrb[0].mxu0 %v759
          %v901 = vpop.f32.mrb[0].mxu0
          %v902 = vadd.f32 0.0, %v901
          %v903 = vpop.f32.mrb[0].mxu0
          %v904 = vpop.f32.mrb[0].mxu0
          %v905 = vadd.f32 0.0, %v904
          %v906 = vpop.f32.mrb[0].mxu0
          %907 = vmatprep.mubr.bf16.mxu0 0
          %908 = vmatmul.mubr.bf16.gmra.mrb[0].mxu0 %v762
          %v909 = vpop.f32.mrb[0].mxu0
          %v910 = vadd.f32 0.0, %v909
          %v911 = vpop.f32.mrb[0].mxu0
          %v912 = vpop.f32.mrb[0].mxu0
          %v913 = vadd.f32 0.0, %v912
          %v914 = vpop.f32.mrb[0].mxu0
          %915 = vmatprep.mubr.bf16.mxu0 0
          %916 = vmatmul.mubr.bf16.gmra.mrb[0].mxu0 %v765
          %v917 = vpop.f32.mrb[0].mxu0
          %v918 = vadd.f32 0.0, %v917
          %v919 = vpop.f32.mrb[0].mxu0
          %v920 = vpop.f32.mrb[0].mxu0
          %v921 = vadd.f32 0.0, %v920
          %v922 = vpop.f32.mrb[0].mxu0
          %923 = vmatprep.mubr.bf16.mxu0 0
          %924 = vmatmul.mubr.bf16.gmra.mrb[0].mxu0 %v768
          %v925 = vpop.f32.mrb[0].mxu0
          %v926 = vadd.f32 0.0, %v925
          %v927 = vpop.f32.mrb[0].mxu0
          %v928 = vpop.f32.mrb[0].mxu0
          %v929 = vadd.f32 0.0, %v928
          %v930 = vpop.f32.mrb[0].mxu0
          %931 = vmatprep.mubr.bf16.mxu0 0
          %932 = vmatmul.mubr.bf16.gmra.mrb[0].mxu0 %v771
          %v933 = vpop.f32.mrb[0].mxu0
          %v934 = vadd.f32 0.0, %v933
          %v935 = vpop.f32.mrb[0].mxu0
          %v936 = vpop.f32.mrb[0].mxu0
          %v937 = vadd.f32 0.0, %v936
          %v938 = vpop.f32.mrb[0].mxu0
          %939 = vmatprep.mubr.bf16.mxu0 0
          %940 = vmatmul.mubr.bf16.gmra.mrb[0].mxu0 %v774
          %v941 = vpop.f32.mrb[0].mxu0
          %v942 = vadd.f32 0.0, %v941
          %v943 = vpop.f32.mrb[0].mxu0
          %v944 = vpop.f32.mrb[0].mxu0
          %v945 = vadd.f32 0.0, %v944
          %v946 = vpop.f32.mrb[0].mxu0
          %947 = vmatprep.mubr.bf16.mxu0 0
          %948 = vmatmul.mubr.bf16.gmra.mrb[0].mxu0 %v777
          %v949 = vpop.f32.mrb[0].mxu0
          %v950 = vadd.f32 0.0, %v949
          %v951 = vpop.f32.mrb[0].mxu0
          %v952 = vpop.f32.mrb[0].mxu0
          %v953 = vadd.f32 0.0, %v952
          %v954 = vpop.f32.mrb[0].mxu0
          %955 = vmatprep.mubr.bf16.mxu0 0
          %956 = vmatmul.mubr.bf16.gmra.mrb[0].mxu0 %v780
          %v957 = vpop.f32.mrb[0].mxu0
          %v958 = vadd.f32 0.0, %v957
          %v959 = vpop.f32.mrb[0].mxu0
          %v960 = vpop.f32.mrb[0].mxu0
          %v961 = vadd.f32 0.0, %v960
          %v962 = vpop.f32.mrb[0].mxu0
          %963 = vmatprep.mubr.bf16.mxu0 0
          %964 = vmatmul.mubr.bf16.gmra.mrb[0].mxu0 %v783
          %v965 = vpop.f32.mrb[0].mxu0
          %v966 = vadd.f32 0.0, %v965
          %v967 = vpop.f32.mrb[0].mxu0
          %v968 = vpop.f32.mrb[0].mxu0
          %v969 = vadd.f32 0.0, %v968
          %v970 = vpop.f32.mrb[0].mxu0
          %971 = vmatprep.mubr.bf16.mxu0 0
          %972 = vmatmul.mubr.bf16.gmra.mrb[0].mxu0 %v786
          %v973 = vpop.f32.mrb[0].mxu0
          %v974 = vadd.f32 0.0, %v973
          %v975 = vpop.f32.mrb[0].mxu0
          %v976 = vpop.f32.mrb[0].mxu0
          %v977 = vadd.f32 0.0, %v976
          %v978 = vpop.f32.mrb[0].mxu0
          %979 = vmatprep.mubr.bf16.mxu0 0
          %980 = vmatmul.mubr.bf16.gmra.mrb[0].mxu0 %v789
          %v981 = vpop.f32.mrb[0].mxu0
          %v982 = vadd.f32 0.0, %v981
          %v983 = vpop.f32.mrb[0].mxu0
          %v984 = vpop.f32.mrb[0].mxu0
          %v985 = vadd.f32 0.0, %v984
          %v986 = vpop.f32.mrb[0].mxu0
          %987 = vmatprep.mubr.bf16.mxu0 0
          %988 = vmatmul.mubr.bf16.gmra.mrb[0].mxu0 %v792
          %v989 = vpop.f32.mrb[0].mxu0
          %v990 = vadd.f32 0.0, %v989
          %v991 = vpop.f32.mrb[0].mxu0
          %v992 = vpop.f32.mrb[0].mxu0
          %v993 = vadd.f32 0.0, %v992
          %v994 = vpop.f32.mrb[0].mxu0
          %995 = vmatprep.mubr.bf16.mxu0 0
          %996 = vmatmul.mubr.bf16.gmra.mrb[0].mxu0 %v795
          %v997 = vpop.f32.mrb[0].mxu0
          %v998 = vadd.f32 0.0, %v997
          %v999 = vpop.f32.mrb[0].mxu0
          %v1000 = vpop.f32.mrb[0].mxu0
          %v1001 = vadd.f32 0.0, %v1000
          %v1002 = vpop.f32.mrb[0].mxu0
          %1003 = vmatprep.mubr.bf16.mxu0 0
          %1004 = vmatmul.mubr.bf16.gmra.mrb[0].mxu0 %v798
          %v1005 = vpop.f32.mrb[0].mxu0
          %v1006 = vadd.f32 0.0, %v1005
          %v1007 = vpop.f32.mrb[0].mxu0
          %v1008 = vpop.f32.mrb[0].mxu0
          %v1009 = vadd.f32 0.0, %v1008
          %v1010 = vpop.f32.mrb[0].mxu0
          %1011 = vmatprep.mubr.bf16.mxu0 0
          %1012 = vmatmul.mubr.bf16.gmra.mrb[0].mxu0 %v801
          %v1013 = vpop.f32.mrb[0].mxu0
          %v1014 = vadd.f32 0.0, %v1013
          %v1015 = vpop.f32.mrb[0].mxu0
          %v1016 = vpop.f32.mrb[0].mxu0
          %v1017 = vadd.f32 0.0, %v1016
          %v1018 = vpop.f32.mrb[0].mxu0
          %1019 = vmatprep.mubr.bf16.mxu0 0
          %1020 = vmatmul.mubr.bf16.gmra.mrb[0].mxu0 %v804
          %v1021 = vpop.f32.mrb[0].mxu0
          %v1022 = vadd.f32 0.0, %v1021
          %v1023 = vpop.f32.mrb[0].mxu0
          %v1024 = vpop.f32.mrb[0].mxu0
          %v1025 = vadd.f32 0.0, %v1024
          %v1026 = vpop.f32.mrb[0].mxu0
          %1027 = vmatprep.mubr.bf16.mxu0 0
          %1028 = vmatmul.mubr.bf16.gmra.mrb[0].mxu0 %v807
          %v1029 = vpop.f32.mrb[0].mxu0
          %v1030 = vadd.f32 0.0, %v1029
          %v1031 = vpop.f32.mrb[0].mxu0
          %v1032 = vpop.f32.mrb[0].mxu0
          %v1033 = vadd.f32 0.0, %v1032
          %v1034 = vpop.f32.mrb[0].mxu0
          %1035 = vmatprep.mubr.bf16.mxu0 0
          %1036 = vmatmul.mubr.bf16.gmra.mrb[0].mxu0 %v810
          %v1037 = vpop.f32.mrb[0].mxu0
          %v1038 = vadd.f32 0.0, %v1037
          %v1039 = vpop.f32.mrb[0].mxu0
          %v1040 = vpop.f32.mrb[0].mxu0
          %v1041 = vadd.f32 0.0, %v1040
          %v1042 = vpop.f32.mrb[0].mxu0
          %1043 = vmatprep.mubr.bf16.mxu0 0
          %1044 = vmatmul.mubr.bf16.gmra.mrb[0].mxu0 %v813
          %v1045 = vpop.f32.mrb[0].mxu0
          %v1046 = vadd.f32 0.0, %v1045
          %v1047 = vpop.f32.mrb[0].mxu0
          %v1048 = vpop.f32.mrb[0].mxu0
          %v1049 = vadd.f32 0.0, %v1048
          %v1050 = vpop.f32.mrb[0].mxu0
          %1051 = vmatprep.mubr.bf16.mxu0 0
          %1052 = vmatmul.mubr.bf16.gmra.mrb[0].mxu0 %v816
          %v1053 = vpop.f32.mrb[0].mxu0
          %v1054 = vadd.f32 0.0, %v1053
          %v1055 = vpop.f32.mrb[0].mxu0
          %v1056 = vpop.f32.mrb[0].mxu0
          %v1057 = vadd.f32 0.0, %v1056
          %v1058 = vpop.f32.mrb[0].mxu0
          %1059 = vmatprep.mubr.bf16.mxu0 0
          %1060 = vmatmul.mubr.bf16.gmra.mrb[0].mxu0 %v819
          %v1061 = vpop.f32.mrb[0].mxu0
          %v1062 = vadd.f32 0.0, %v1061
          %v1063 = vpop.f32.mrb[0].mxu0
          %v1064 = vpop.f32.mrb[0].mxu0
          %v1065 = vadd.f32 0.0, %v1064
          %v1066 = vpop.f32.mrb[0].mxu0
          %1067 = vmatprep.mubr.bf16.mxu0 0
          %1068 = vmatmul.mubr.bf16.gmra.mrb[0].mxu0 %v822
          %v1069 = vpop.f32.mrb[0].mxu0
          %v1070 = vadd.f32 0.0, %v1069
          %v1071 = vpop.f32.mrb[0].mxu0
          %v1072 = vpop.f32.mrb[0].mxu0
          %v1073 = vadd.f32 0.0, %v1072
          %v1074 = vpop.f32.mrb[0].mxu0
          %1075 = vmatprep.mubr.bf16.mxu0 0
          %1076 = vmatmul.mubr.bf16.gmra.mrb[0].mxu0 %v825
          %v1077 = vpop.f32.mrb[0].mxu0
          %v1078 = vadd.f32 0.0, %v1077
          %v1079 = vpop.f32.mrb[0].mxu0
          %v1080 = vpop.f32.mrb[0].mxu0
          %v1081 = vadd.f32 0.0, %v1080
          %v1082 = vpop.f32.mrb[0].mxu0
          %1083 = vmatprep.mubr.bf16.mxu0 0
          %1084 = vmatmul.mubr.bf16.gmra.mrb[0].mxu0 %v828
          %v1085 = vpop.f32.mrb[0].mxu0
          %v1086 = vadd.f32 0.0, %v1085
          %v1087 = vpop.f32.mrb[0].mxu0
          %v1088 = vpop.f32.mrb[0].mxu0
          %v1089 = vadd.f32 0.0, %v1088
          %v1090 = vpop.f32.mrb[0].mxu0
          %1091 = vmatprep.mubr.bf16.mxu0 0
          %1092 = vmatmul.mubr.bf16.gmra.mrb[0].mxu0 %v831
          %v1093 = vpop.f32.mrb[0].mxu0
          %v1094 = vadd.f32 0.0, %v1093
          %v1095 = vpop.f32.mrb[0].mxu0
          %v1096 = vpop.f32.mrb[0].mxu0
          %v1097 = vadd.f32 0.0, %v1096
          %v1098 = vpop.f32.mrb[0].mxu0
          %1099 = vmatprep.mubr.bf16.mxu0 0
          %1100 = vmatmul.mubr.bf16.gmra.mrb[0].mxu0 %v834
          %v1101 = vpop.f32.mrb[0].mxu0
          %v1102 = vadd.f32 0.0, %v1101
          %v1103 = vpop.f32.mrb[0].mxu0
          %v1104 = vpop.f32.mrb[0].mxu0
          %v1105 = vadd.f32 0.0, %v1104
          %v1106 = vpop.f32.mrb[0].mxu0
          %1107 = vmatprep.mubr.bf16.mxu0 0
          %1108 = vmatmul.mubr.bf16.gmra.mrb[0].mxu0 %v837
          %v1109 = vpop.f32.mrb[0].mxu0
          %v1110 = vadd.f32 0.0, %v1109
          %v1111 = vpop.f32.mrb[0].mxu0
          %v1112 = vpop.f32.mrb[0].mxu0
          %v1113 = vadd.f32 0.0, %v1112
          %v1114 = vpop.f32.mrb[0].mxu0
          %1115 = vmatprep.mubr.bf16.mxu0 0
          %1116 = vmatmul.mubr.bf16.gmra.mrb[0].mxu0 %v840
          %v1117 = vpop.f32.mrb[0].mxu0
          %v1118 = vadd.f32 0.0, %v1117
          %v1119 = vpop.f32.mrb[0].mxu0
          %v1120 = vpop.f32.mrb[0].mxu0
          %v1121 = vadd.f32 0.0, %v1120
          %v1122 = vpop.f32.mrb[0].mxu0
          %1123 = vmatprep.mubr.bf16.mxu0 0
          %1124 = vmatmul.mubr.bf16.gmra.mrb[0].mxu0 %v843
          %v1125 = vpop.f32.mrb[0].mxu0
          %v1126 = vadd.f32 0.0, %v1125
          %v1127 = vpop.f32.mrb[0].mxu0
          %v1128 = vpop.f32.mrb[0].mxu0
          %v1129 = vadd.f32 0.0, %v1128
          %v1130 = vpop.f32.mrb[0].mxu0
          %1131 = vmatprep.mubr.bf16.mxu0 0
          %1132 = vmatmul.mubr.bf16.gmra.mrb[0].mxu0 %v846
          %v1133 = vpop.f32.mrb[0].mxu0
          %v1134 = vadd.f32 0.0, %v1133
          %v1135 = vpop.f32.mrb[0].mxu0
          %v1136 = vpop.f32.mrb[0].mxu0
          %v1137 = vadd.f32 0.0, %v1136
          %v1138 = vpop.f32.mrb[0].mxu0
          %1139 = vdwg.mxu0
          %1140 = vxpose.xlu0.b32.start [1/16] %v886, 128
          %1141 = vxpose.xlu0.b32.cont [2/16] %v889, 128
          %1142 = vxpose.xlu0.b32.cont [3/16] %v894, 128
          %1143 = vxpose.xlu0.b32.cont [4/16] %v897, 128
          %1144 = vxpose.xlu0.b32.cont [5/16] %v902, 128
          %1145 = vxpose.xlu0.b32.cont [6/16] %v905, 128
          %1146 = vxpose.xlu0.b32.cont [7/16] %v910, 128
          %1147 = vxpose.xlu0.b32.cont [8/16] %v913, 128
          %1148 = vxpose.xlu0.b32.cont [9/16] 0.0, 128
          %1149 = vxpose.xlu0.b32.cont [10/16] 0.0, 128
          %1150 = vxpose.xlu0.b32.cont [11/16] 0.0, 128
          %1151 = vxpose.xlu0.b32.cont [12/16] 0.0, 128
          %1152 = vxpose.xlu0.b32.cont [13/16] 0.0, 128
          %1153 = vxpose.xlu0.b32.cont [14/16] 0.0, 128
          %1154 = vxpose.xlu0.b32.cont [15/16] 0.0, 128
          %1155 = vxpose.xlu0.b32.end [16/16] 0.0, 128
          %v1156 = vpop.trf.xlu0
          %v1157 = vpop.trf.xlu0
          %v1158 = vpop.trf.xlu0
          %v1159 = vpop.trf.xlu0
          %v1160 = vpop.trf.xlu0
          %v1161 = vpop.trf.xlu0
          %v1162 = vpop.trf.xlu0
          %v1163 = vpop.trf.xlu0
          %v1164 = vpop.trf.xlu0
          %v1165 = vpop.trf.xlu0
          %v1166 = vpop.trf.xlu0
          %v1167 = vpop.trf.xlu0
          %v1168 = vpop.trf.xlu0
          %v1169 = vpop.trf.xlu0
          %v1170 = vpop.trf.xlu0
          %v1171 = vpop.trf.xlu0
          %1172 = vxpose.xlu0.b32.start [1/16] %v918, 128
          %1173 = vxpose.xlu0.b32.cont [2/16] %v921, 128
          %1174 = vxpose.xlu0.b32.cont [3/16] %v926, 128
          %1175 = vxpose.xlu0.b32.cont [4/16] %v929, 128
          %1176 = vxpose.xlu0.b32.cont [5/16] %v934, 128
          %1177 = vxpose.xlu0.b32.cont [6/16] %v937, 128
          %1178 = vxpose.xlu0.b32.cont [7/16] %v942, 128
          %1179 = vxpose.xlu0.b32.cont [8/16] %v945, 128
          %1180 = vxpose.xlu0.b32.cont [9/16] 0.0, 128
          %1181 = vxpose.xlu0.b32.cont [10/16] 0.0, 128
          %1182 = vxpose.xlu0.b32.cont [11/16] 0.0, 128
          %1183 = vxpose.xlu0.b32.cont [12/16] 0.0, 128
          %1184 = vxpose.xlu0.b32.cont [13/16] 0.0, 128
          %1185 = vxpose.xlu0.b32.cont [14/16] 0.0, 128
          %1186 = vxpose.xlu0.b32.cont [15/16] 0.0, 128
          %1187 = vxpose.xlu0.b32.end [16/16] 0.0, 128
          %v1188 = vpop.trf.xlu0
          %v1189 = vpop.trf.xlu0
          %v1190 = vpop.trf.xlu0
          %v1191 = vpop.trf.xlu0
          %v1192 = vpop.trf.xlu0
          %v1193 = vpop.trf.xlu0
          %v1194 = vpop.trf.xlu0
          %v1195 = vpop.trf.xlu0
          %v1196 = vpop.trf.xlu0
          %v1197 = vpop.trf.xlu0
          %v1198 = vpop.trf.xlu0
          %v1199 = vpop.trf.xlu0
          %v1200 = vpop.trf.xlu0
          %v1201 = vpop.trf.xlu0
          %v1202 = vpop.trf.xlu0
          %v1203 = vpop.trf.xlu0
          %1204 = vxpose.xlu0.b32.start [1/16] %v950, 128
          %1205 = vxpose.xlu0.b32.cont [2/16] %v953, 128
          %1206 = vxpose.xlu0.b32.cont [3/16] %v958, 128
          %1207 = vxpose.xlu0.b32.cont [4/16] %v961, 128
          %1208 = vxpose.xlu0.b32.cont [5/16] %v966, 128
          %1209 = vxpose.xlu0.b32.cont [6/16] %v969, 128
          %1210 = vxpose.xlu0.b32.cont [7/16] %v974, 128
          %1211 = vxpose.xlu0.b32.cont [8/16] %v977, 128
          %1212 = vxpose.xlu0.b32.cont [9/16] 0.0, 128
          %1213 = vxpose.xlu0.b32.cont [10/16] 0.0, 128
          %1214 = vxpose.xlu0.b32.cont [11/16] 0.0, 128
          %1215 = vxpose.xlu0.b32.cont [12/16] 0.0, 128
          %1216 = vxpose.xlu0.b32.cont [13/16] 0.0, 128
          %1217 = vxpose.xlu0.b32.cont [14/16] 0.0, 128
          %1218 = vxpose.xlu0.b32.cont [15/16] 0.0, 128
          %1219 = vxpose.xlu0.b32.end [16/16] 0.0, 128
          %v1220 = vpop.trf.xlu0
          %v1221 = vpop.trf.xlu0
          %v1222 = vpop.trf.xlu0
          %v1223 = vpop.trf.xlu0
          %v1224 = vpop.trf.xlu0
          %v1225 = vpop.trf.xlu0
          %v1226 = vpop.trf.xlu0
          %v1227 = vpop.trf.xlu0
          %v1228 = vpop.trf.xlu0
          %v1229 = vpop.trf.xlu0
          %v1230 = vpop.trf.xlu0
          %v1231 = vpop.trf.xlu0
          %v1232 = vpop.trf.xlu0
          %v1233 = vpop.trf.xlu0
          %v1234 = vpop.trf.xlu0
          %v1235 = vpop.trf.xlu0
          %1236 = vxpose.xlu0.b32.start [1/16] %v982, 128
          %1237 = vxpose.xlu0.b32.cont [2/16] %v985, 128
          %1238 = vxpose.xlu0.b32.cont [3/16] %v990, 128
          %1239 = vxpose.xlu0.b32.cont [4/16] %v993, 128
          %1240 = vxpose.xlu0.b32.cont [5/16] %v998, 128
          %1241 = vxpose.xlu0.b32.cont [6/16] %v1001, 128
          %1242 = vxpose.xlu0.b32.cont [7/16] %v1006, 128
          %1243 = vxpose.xlu0.b32.cont [8/16] %v1009, 128
          %1244 = vxpose.xlu0.b32.cont [9/16] 0.0, 128
          %1245 = vxpose.xlu0.b32.cont [10/16] 0.0, 128
          %1246 = vxpose.xlu0.b32.cont [11/16] 0.0, 128
          %1247 = vxpose.xlu0.b32.cont [12/16] 0.0, 128
          %1248 = vxpose.xlu0.b32.cont [13/16] 0.0, 128
          %1249 = vxpose.xlu0.b32.cont [14/16] 0.0, 128
          %1250 = vxpose.xlu0.b32.cont [15/16] 0.0, 128
          %1251 = vxpose.xlu0.b32.end [16/16] 0.0, 128
          %v1252 = vpop.trf.xlu0
          %v1253 = vpop.trf.xlu0
          %v1254 = vpop.trf.xlu0
          %v1255 = vpop.trf.xlu0
          %v1256 = vpop.trf.xlu0
          %v1257 = vpop.trf.xlu0
          %v1258 = vpop.trf.xlu0
          %v1259 = vpop.trf.xlu0
          %v1260 = vpop.trf.xlu0
          %v1261 = vpop.trf.xlu0
          %v1262 = vpop.trf.xlu0
          %v1263 = vpop.trf.xlu0
          %v1264 = vpop.trf.xlu0
          %v1265 = vpop.trf.xlu0
          %v1266 = vpop.trf.xlu0
          %v1267 = vpop.trf.xlu0
          %1268 = vxpose.xlu0.b32.start [1/16] %v1014, 128
          %1269 = vxpose.xlu0.b32.cont [2/16] %v1017, 128
          %1270 = vxpose.xlu0.b32.cont [3/16] %v1022, 128
          %1271 = vxpose.xlu0.b32.cont [4/16] %v1025, 128
          %1272 = vxpose.xlu0.b32.cont [5/16] %v1030, 128
          %1273 = vxpose.xlu0.b32.cont [6/16] %v1033, 128
          %1274 = vxpose.xlu0.b32.cont [7/16] %v1038, 128
          %1275 = vxpose.xlu0.b32.cont [8/16] %v1041, 128
          %1276 = vxpose.xlu0.b32.cont [9/16] 0.0, 128
          %1277 = vxpose.xlu0.b32.cont [10/16] 0.0, 128
          %1278 = vxpose.xlu0.b32.cont [11/16] 0.0, 128
          %1279 = vxpose.xlu0.b32.cont [12/16] 0.0, 128
          %1280 = vxpose.xlu0.b32.cont [13/16] 0.0, 128
          %1281 = vxpose.xlu0.b32.cont [14/16] 0.0, 128
          %1282 = vxpose.xlu0.b32.cont [15/16] 0.0, 128
          %1283 = vxpose.xlu0.b32.end [16/16] 0.0, 128
          %v1284 = vpop.trf.xlu0
          %v1285 = vpop.trf.xlu0
          %v1286 = vpop.trf.xlu0
          %v1287 = vpop.trf.xlu0
          %v1288 = vpop.trf.xlu0
          %v1289 = vpop.trf.xlu0
          %v1290 = vpop.trf.xlu0
          %v1291 = vpop.trf.xlu0
          %v1292 = vpop.trf.xlu0
          %v1293 = vpop.trf.xlu0
          %v1294 = vpop.trf.xlu0
          %v1295 = vpop.trf.xlu0
          %v1296 = vpop.trf.xlu0
          %v1297 = vpop.trf.xlu0
          %v1298 = vpop.trf.xlu0
          %v1299 = vpop.trf.xlu0
          %1300 = vxpose.xlu0.b32.start [1/16] %v1046, 128
          %1301 = vxpose.xlu0.b32.cont [2/16] %v1049, 128
          %1302 = vxpose.xlu0.b32.cont [3/16] %v1054, 128
          %1303 = vxpose.xlu0.b32.cont [4/16] %v1057, 128
          %1304 = vxpose.xlu0.b32.cont [5/16] %v1062, 128
          %1305 = vxpose.xlu0.b32.cont [6/16] %v1065, 128
          %1306 = vxpose.xlu0.b32.cont [7/16] %v1070, 128
          %1307 = vxpose.xlu0.b32.cont [8/16] %v1073, 128
          %1308 = vxpose.xlu0.b32.cont [9/16] 0.0, 128
          %1309 = vxpose.xlu0.b32.cont [10/16] 0.0, 128
          %1310 = vxpose.xlu0.b32.cont [11/16] 0.0, 128
          %1311 = vxpose.xlu0.b32.cont [12/16] 0.0, 128
          %1312 = vxpose.xlu0.b32.cont [13/16] 0.0, 128
          %1313 = vxpose.xlu0.b32.cont [14/16] 0.0, 128
          %1314 = vxpose.xlu0.b32.cont [15/16] 0.0, 128
          %1315 = vxpose.xlu0.b32.end [16/16] 0.0, 128
          %v1316 = vpop.trf.xlu0
          %v1317 = vpop.trf.xlu0
          %v1318 = vpop.trf.xlu0
          %v1319 = vpop.trf.xlu0
          %v1320 = vpop.trf.xlu0
          %v1321 = vpop.trf.xlu0
          %v1322 = vpop.trf.xlu0
          %v1323 = vpop.trf.xlu0
          %v1324 = vpop.trf.xlu0
          %v1325 = vpop.trf.xlu0
          %v1326 = vpop.trf.xlu0
          %v1327 = vpop.trf.xlu0
          %v1328 = vpop.trf.xlu0
          %v1329 = vpop.trf.xlu0
          %v1330 = vpop.trf.xlu0
          %v1331 = vpop.trf.xlu0
          %1332 = vxpose.xlu0.b32.start [1/16] %v1078, 128
          %1333 = vxpose.xlu0.b32.cont [2/16] %v1081, 128
          %1334 = vxpose.xlu0.b32.cont [3/16] %v1086, 128
          %1335 = vxpose.xlu0.b32.cont [4/16] %v1089, 128
          %1336 = vxpose.xlu0.b32.cont [5/16] %v1094, 128
          %1337 = vxpose.xlu0.b32.cont [6/16] %v1097, 128
          %1338 = vxpose.xlu0.b32.cont [7/16] %v1102, 128
          %1339 = vxpose.xlu0.b32.cont [8/16] %v1105, 128
          %1340 = vxpose.xlu0.b32.cont [9/16] 0.0, 128
          %1341 = vxpose.xlu0.b32.cont [10/16] 0.0, 128
          %1342 = vxpose.xlu0.b32.cont [11/16] 0.0, 128
          %1343 = vxpose.xlu0.b32.cont [12/16] 0.0, 128
          %1344 = vxpose.xlu0.b32.cont [13/16] 0.0, 128
          %1345 = vxpose.xlu0.b32.cont [14/16] 0.0, 128
          %1346 = vxpose.xlu0.b32.cont [15/16] 0.0, 128
          %1347 = vxpose.xlu0.b32.end [16/16] 0.0, 128
          %v1348 = vpop.trf.xlu0
          %v1349 = vpop.trf.xlu0
          %v1350 = vpop.trf.xlu0
          %v1351 = vpop.trf.xlu0
          %v1352 = vpop.trf.xlu0
          %v1353 = vpop.trf.xlu0
          %v1354 = vpop.trf.xlu0
          %v1355 = vpop.trf.xlu0
          %v1356 = vpop.trf.xlu0
          %v1357 = vpop.trf.xlu0
          %v1358 = vpop.trf.xlu0
          %v1359 = vpop.trf.xlu0
          %v1360 = vpop.trf.xlu0
          %v1361 = vpop.trf.xlu0
          %v1362 = vpop.trf.xlu0
          %v1363 = vpop.trf.xlu0
          %1364 = vxpose.xlu0.b32.start [1/16] %v1110, 128
          %1365 = vxpose.xlu0.b32.cont [2/16] %v1113, 128
          %1366 = vxpose.xlu0.b32.cont [3/16] %v1118, 128
          %1367 = vxpose.xlu0.b32.cont [4/16] %v1121, 128
          %1368 = vxpose.xlu0.b32.cont [5/16] %v1126, 128
          %1369 = vxpose.xlu0.b32.cont [6/16] %v1129, 128
          %1370 = vxpose.xlu0.b32.cont [7/16] %v1134, 128
          %1371 = vxpose.xlu0.b32.cont [8/16] %v1137, 128
          %1372 = vxpose.xlu0.b32.cont [9/16] 0.0, 128
          %1373 = vxpose.xlu0.b32.cont [10/16] 0.0, 128
          %1374 = vxpose.xlu0.b32.cont [11/16] 0.0, 128
          %1375 = vxpose.xlu0.b32.cont [12/16] 0.0, 128
          %1376 = vxpose.xlu0.b32.cont [13/16] 0.0, 128
          %1377 = vxpose.xlu0.b32.cont [14/16] 0.0, 128
          %1378 = vxpose.xlu0.b32.cont [15/16] 0.0, 128
          %1379 = vxpose.xlu0.b32.end [16/16] 0.0, 128
          %v1380 = vpop.trf.xlu0
          %v1381 = vpop.trf.xlu0
          %v1382 = vpop.trf.xlu0
          %v1383 = vpop.trf.xlu0
          %v1384 = vpop.trf.xlu0
          %v1385 = vpop.trf.xlu0
          %v1386 = vpop.trf.xlu0
          %v1387 = vpop.trf.xlu0
          %v1388 = vpop.trf.xlu0
          %v1389 = vpop.trf.xlu0
          %v1390 = vpop.trf.xlu0
          %v1391 = vpop.trf.xlu0
          %v1392 = vpop.trf.xlu0
          %v1393 = vpop.trf.xlu0
          %v1394 = vpop.trf.xlu0
          %v1395 = vpop.trf.xlu0
          %v1396 = vpack.c.bf16 %v1157, %v1156
          %v1397 = vpack.c.bf16 %v1189, %v1188
          %v1398 = vpack.c.bf16 %v1221, %v1220
          %v1399 = vpack.c.bf16 %v1253, %v1252
          %v1400 = vpack.c.bf16 %v1285, %v1284
          %v1401 = vpack.c.bf16 %v1317, %v1316
          %v1402 = vpack.c.bf16 %v1349, %v1348
          %v1403 = vpack.c.bf16 %v1381, %v1380
          %vm1404 = vcmask 523264
          %1405 = vst.msk [vmem:[#allocation2] sm:$0xff] %vm1404, %v1396
          %1406 = vst.msk [vmem:[#allocation2 + $0x8] sm:$0xff] %vm1404, %v1397
          %1407 = vst.msk [vmem:[#allocation2 + $0x10] sm:$0xff] %vm1404, %v1398
          %1408 = vst.msk [vmem:[#allocation2 + $0x18] sm:$0xff] %vm1404, %v1399
          %1409 = vst.msk [vmem:[#allocation2 + $0x20] sm:$0xff] %vm1404, %v1400
          %1410 = vst.msk [vmem:[#allocation2 + $0x28] sm:$0xff] %vm1404, %v1401
          %1411 = vst.msk [vmem:[#allocation2 + $0x30] sm:$0xff] %vm1404, %v1402
          %1412 = vst.msk [vmem:[#allocation2 + $0x38] sm:$0xff] %vm1404, %v1403
          %vm1413 = vcmask 253952
          %1414 = vst.msk [vmem:[%s432] sm:$0x1] %vm1413, 0.0
        $region64: #{tpu_custom_call.1} parent=51 // pred_fallthru
          _
        %v1415 = vld [vmem:[%s376] sm:$0xf]
        %v1416 = vld [vmem:[%s376 + $0x4] sm:$0xf]
        %v1417 = vld [vmem:[%s376 + $0x8] sm:$0xf]
        %v1418 = vld [vmem:[%s376 + $0xc] sm:$0xf]
        %v1419 = vld [vmem:[%s376 + $0x10] sm:$0xf]
        %v1420 = vld [vmem:[%s376 + $0x14] sm:$0xf]
        %v1421 = vld [vmem:[%s376 + $0x18] sm:$0xf]
        %v1422 = vld [vmem:[%s376 + $0x1c] sm:$0xf]
        %v1423 = vld [vmem:[%s376 + $0x20] sm:$0xf]
        %v1424 = vld [vmem:[%s376 + $0x24] sm:$0xf]
        %v1425 = vld [vmem:[%s376 + $0x28] sm:$0xf]
        %v1426 = vld [vmem:[%s376 + $0x2c] sm:$0xf]
        %v1427 = vld [vmem:[%s376 + $0x30] sm:$0xf]
        %v1428 = vld [vmem:[%s376 + $0x34] sm:$0xf]
        %v1429 = vld [vmem:[%s376 + $0x38] sm:$0xf]
        %v1430 = vld [vmem:[%s376 + $0x3c] sm:$0xf]
        %v1431 = vld [vmem:[%s2] sm:$0xf]
        %v1432 = vld [vmem:[%s2 + $0x4] sm:$0xf]
        %v1433 = vld [vmem:[%s3] sm:$0x1]
        %v1435 = vlaneseq
        %v1436 = vshrl.u32 %v1435, 7
        %v1437 = vsub.s32 0, %v1436
        %v1438 = vrot.slane %v1433, %v1437
        %v1456 = vunpack.c.l.b16 %v1415
        %v1457 = vunpack.c.l.b16 %v1416
        %v1458 = vunpack.c.l.b16 %v1417
        %v1459 = vunpack.c.l.b16 %v1418
        %v1460 = vunpack.c.l.b16 %v1419
        %v1461 = vunpack.c.l.b16 %v1420
        %v1462 = vunpack.c.l.b16 %v1421
        %v1463 = vunpack.c.l.b16 %v1422
        %v1464 = vunpack.c.l.b16 %v1423
        %v1465 = vunpack.c.l.b16 %v1424
        %v1466 = vunpack.c.l.b16 %v1425
        %v1467 = vunpack.c.l.b16 %v1426
        %v1468 = vunpack.c.l.b16 %v1427
        %v1469 = vunpack.c.l.b16 %v1428
        %v1470 = vunpack.c.l.b16 %v1429
        %v1471 = vunpack.c.l.b16 %v1430
        %v1472 = vpack.c.b16 %v1457, %v1456
        %v1473 = vpack.c.b16 %v1459, %v1458
        %v1474 = vpack.c.b16 %v1461, %v1460
        %v1475 = vpack.c.b16 %v1463, %v1462
        %v1476 = vpack.c.b16 %v1465, %v1464
        %v1477 = vpack.c.b16 %v1467, %v1466
        %v1478 = vpack.c.b16 %v1469, %v1468
        %v1479 = vpack.c.b16 %v1471, %v1470
        %v1482 = vunpack.c.l.b16 %v1431
        %v1483 = vunpack.c.l.b16 %v1432
        %v1484 = vpack.c.b16 %v1483, %v1482
        %vm1486 = vcmask 130048
        %v1488 = vsel %vm1486, %v1472, 0
        %v1491 = vsel %vm1486, %v1473, 0
        %v1494 = vsel %vm1486, %v1474, 0
        %v1497 = vsel %vm1486, %v1475, 0
        %v1500 = vsel %vm1486, %v1476, 0
        %v1503 = vsel %vm1486, %v1477, 0
        %v1506 = vsel %vm1486, %v1478, 0
        %v1509 = vsel %vm1486, %v1479, 0
        %1511 = vmatprep.subr.bf16.mxu0 0
        %1512 = vmatpush1.bf16.msra.mxu0 %v1484
        %1513 = vmatprep.subr.bf16.mxu0 0
        %1514 = vmatpush1.bf16.msra.mxu0 0
        %1515 = vmatprep.subr.bf16.mxu0 0
        %1516 = vmatpush1.bf16.msra.mxu0 0
        %1517 = vmatprep.subr.bf16.mxu0 0
        %1518 = vmatpush1.bf16.msra.mxu0 0
        %1519 = vmatprep.subr.bf16.mxu0 0
        %1520 = vmatpush1.bf16.msra.mxu0 0
        %1521 = vmatprep.subr.bf16.mxu0 0
        %1522 = vmatpush1.bf16.msra.mxu0 0
        %1523 = vmatprep.subr.bf16.mxu0 0
        %1524 = vmatpush1.bf16.msra.mxu0 0
        %1525 = vmatprep.subr.bf16.mxu0 0
        %1526 = vmatpush1.bf16.msra.mxu0 0
        %1527 = vmatprep.subr.bf16.mxu0 0
        %1528 = vmatpush1.bf16.msra.mxu0 0
        %1529 = vmatprep.subr.bf16.mxu0 0
        %1530 = vmatpush1.bf16.msra.mxu0 0
        %1531 = vmatprep.subr.bf16.mxu0 0
        %1532 = vmatpush1.bf16.msra.mxu0 0
        %1533 = vmatprep.subr.bf16.mxu0 0
        %1534 = vmatpush1.bf16.msra.mxu0 0
        %1535 = vmatprep.subr.bf16.mxu0 0
        %1536 = vmatpush1.bf16.msra.mxu0 0
        %1537 = vmatprep.subr.bf16.mxu0 0
        %1538 = vmatpush1.bf16.msra.mxu0 0
        %1539 = vmatprep.subr.bf16.mxu0 0
        %1540 = vmatpush1.bf16.msra.mxu0 0
        %1541 = vmatprep.subr.bf16.mxu0 0
        %1542 = vmatpush1.bf16.msra.mxu0 0
        %1543 = vmatprep.mubr.bf16.mxu0 0
        %1544 = vmatmul.mubr.bf16.gmra.mrb[0].mxu0 %v1488
        %v1545 = vpop.f32.mrb[0].mxu0
        %v1546 = vadd.f32 %v1438, %v1545
        %v1547 = vpop.f32.mrb[0].mxu0
        %v1548 = vpop.f32.mrb[0].mxu0
        %v1549 = vadd.f32 %v1438, %v1548
        %v1550 = vpop.f32.mrb[0].mxu0
        %1551 = vmatprep.mubr.bf16.mxu0 0
        %1552 = vmatmul.mubr.bf16.gmra.mrb[0].mxu0 %v1491
        %v1553 = vpop.f32.mrb[0].mxu0
        %v1554 = vadd.f32 %v1438, %v1553
        %v1555 = vpop.f32.mrb[0].mxu0
        %v1556 = vpop.f32.mrb[0].mxu0
        %v1557 = vadd.f32 %v1438, %v1556
        %v1558 = vpop.f32.mrb[0].mxu0
        %1559 = vmatprep.mubr.bf16.mxu0 0
        %1560 = vmatmul.mubr.bf16.gmra.mrb[0].mxu0 %v1494
        %v1561 = vpop.f32.mrb[0].mxu0
        %v1562 = vadd.f32 %v1438, %v1561
        %v1563 = vpop.f32.mrb[0].mxu0
        %v1564 = vpop.f32.mrb[0].mxu0
        %v1565 = vadd.f32 %v1438, %v1564
        %v1566 = vpop.f32.mrb[0].mxu0
        %1567 = vmatprep.mubr.bf16.mxu0 0
        %1568 = vmatmul.mubr.bf16.gmra.mrb[0].mxu0 %v1497
        %v1569 = vpop.f32.mrb[0].mxu0
        %v1570 = vadd.f32 %v1438, %v1569
        %v1571 = vpop.f32.mrb[0].mxu0
        %v1572 = vpop.f32.mrb[0].mxu0
        %v1573 = vadd.f32 %v1438, %v1572
        %v1574 = vpop.f32.mrb[0].mxu0
        %1575 = vmatprep.mubr.bf16.mxu0 0
        %1576 = vmatmul.mubr.bf16.gmra.mrb[0].mxu0 %v1500
        %v1577 = vpop.f32.mrb[0].mxu0
        %v1578 = vadd.f32 %v1438, %v1577
        %v1579 = vpop.f32.mrb[0].mxu0
        %v1580 = vpop.f32.mrb[0].mxu0
        %v1581 = vadd.f32 %v1438, %v1580
        %v1582 = vpop.f32.mrb[0].mxu0
        %1583 = vmatprep.mubr.bf16.mxu0 0
        %1584 = vmatmul.mubr.bf16.gmra.mrb[0].mxu0 %v1503
        %v1585 = vpop.f32.mrb[0].mxu0
        %v1586 = vadd.f32 %v1438, %v1585
        %v1587 = vpop.f32.mrb[0].mxu0
        %v1588 = vpop.f32.mrb[0].mxu0
        %v1589 = vadd.f32 %v1438, %v1588
        %v1590 = vpop.f32.mrb[0].mxu0
        %1591 = vmatprep.mubr.bf16.mxu0 0
        %1592 = vmatmul.mubr.bf16.gmra.mrb[0].mxu0 %v1506
        %v1593 = vpop.f32.mrb[0].mxu0
        %v1594 = vadd.f32 %v1438, %v1593
        %v1595 = vpop.f32.mrb[0].mxu0
        %v1596 = vpop.f32.mrb[0].mxu0
        %v1597 = vadd.f32 %v1438, %v1596
        %v1598 = vpop.f32.mrb[0].mxu0
        %1599 = vmatprep.mubr.bf16.mxu0 0
        %1600 = vmatmul.mubr.bf16.gmra.mrb[0].mxu0 %v1509
        %v1601 = vpop.f32.mrb[0].mxu0
        %v1602 = vadd.f32 %v1438, %v1601
        %v1603 = vpop.f32.mrb[0].mxu0
        %v1604 = vpop.f32.mrb[0].mxu0
        %v1605 = vadd.f32 %v1438, %v1604
        %v1606 = vpop.f32.mrb[0].mxu0
        %1607 = vdwg.mxu0
        %v1608 = vld [vmem:[%s437] sm:$0xf]
        %v1609 = vld [vmem:[#allocation2] sm:$0xff]
        %v1610 = vld [vmem:[#allocation2 + $0x8] sm:$0xff]
        %v1611 = vld [vmem:[#allocation2 + $0x10] sm:$0xff]
        %v1612 = vld [vmem:[#allocation2 + $0x18] sm:$0xff]
        %v1613 = vld [vmem:[#allocation2 + $0x20] sm:$0xff]
        %v1614 = vld [vmem:[#allocation2 + $0x28] sm:$0xff]
        %v1615 = vld [vmem:[#allocation2 + $0x30] sm:$0xff]
        %v1616 = vld [vmem:[#allocation2 + $0x38] sm:$0xff]
        %v1619 = vpack.i.b16 %v1610, %v1609
        %v1621 = vshrl.u32 %v1609, 16
        %v1622 = vshrl.u32 %v1610, 16
        %v1623 = vpack.i.b16 %v1622, %v1621
        %v1627 = vpack.i.b16 %v1612, %v1611
        %v1629 = vshrl.u32 %v1611, 16
        %v1630 = vshrl.u32 %v1612, 16
        %v1631 = vpack.i.b16 %v1630, %v1629
        %v1635 = vpack.i.b16 %v1614, %v1613
        %v1637 = vshrl.u32 %v1613, 16
        %v1638 = vshrl.u32 %v1614, 16
        %v1639 = vpack.i.b16 %v1638, %v1637
        %v1643 = vpack.i.b16 %v1616, %v1615
        %v1645 = vshrl.u32 %v1615, 16
        %v1646 = vshrl.u32 %v1616, 16
        %v1647 = vpack.i.b16 %v1646, %v1645
        %v1649 = vcombine.low %v1619, %v1635
        %v1650 = vcombine.high %v1619, %v1635
        %v1652 = vunpack.c.l.s4 1983009808
        %v1653 = vunpack.c.0.s8 %v1652
        %v1654 = vlaneseq
        %v1655 = vshrl.u32 %v1654, 7
        %v1656 = vsub.s32 %v1653, %v1655
        %v1657 = vrot.slane %v1649, %v1656
        %v1659 = vunpack.c.l.s4 1983009808
        %v1660 = vunpack.c.0.s8 %v1659
        %v1661 = vlaneseq
        %v1662 = vshrl.u32 %v1661, 7
        %v1663 = vsub.s32 %v1660, %v1662
        %v1664 = vrot.slane %v1650, %v1663
        %v1665 = vcombine.low %v1627, %v1643
        %v1666 = vcombine.high %v1627, %v1643
        %v1668 = vunpack.c.l.s4 1983009808
        %v1669 = vunpack.c.0.s8 %v1668
        %v1670 = vlaneseq
        %v1671 = vshrl.u32 %v1670, 7
        %v1672 = vsub.s32 %v1669, %v1671
        %v1673 = vrot.slane %v1665, %v1672
        %v1675 = vunpack.c.l.s4 1983009808
        %v1676 = vunpack.c.0.s8 %v1675
        %v1677 = vlaneseq
        %v1678 = vshrl.u32 %v1677, 7
        %v1679 = vsub.s32 %v1676, %v1678
        %v1680 = vrot.slane %v1666, %v1679
        %v1681 = vcombine.low %v1657, %v1673
        %v1682 = vcombine.high %v1657, %v1673
        %v1684 = vunpack.c.l.s4 1934713408
        %v1685 = vunpack.c.0.s8 %v1684
        %v1686 = vlaneseq
        %v1687 = vshrl.u32 %v1686, 7
        %v1688 = vsub.s32 %v1685, %v1687
        %v1689 = vrot.slane %v1681, %v1688
        %v1691 = vunpack.c.l.s4 1934713408
        %v1692 = vunpack.c.0.s8 %v1691
        %v1693 = vlaneseq
        %v1694 = vshrl.u32 %v1693, 7
        %v1695 = vsub.s32 %v1692, %v1694
        %v1696 = vrot.slane %v1682, %v1695
        %v1697 = vcombine.low %v1664, %v1680
        %v1698 = vcombine.high %v1664, %v1680
        %v1700 = vunpack.c.l.s4 1934713408
        %v1701 = vunpack.c.0.s8 %v1700
        %v1702 = vlaneseq
        %v1703 = vshrl.u32 %v1702, 7
        %v1704 = vsub.s32 %v1701, %v1703
        %v1705 = vrot.slane %v1697, %v1704
        %v1707 = vunpack.c.l.s4 1934713408
        %v1708 = vunpack.c.0.s8 %v1707
        %v1709 = vlaneseq
        %v1710 = vshrl.u32 %v1709, 7
        %v1711 = vsub.s32 %v1708, %v1710
        %v1712 = vrot.slane %v1698, %v1711
        %v1713 = vcombine.high %v1689, 0
        %v1714 = vcombine.high %v1696, 0
        %v1715 = vcombine.high %v1705, 0
        %v1716 = vcombine.high %v1712, 0
        %v1717 = vcombine.low %v1623, %v1639
        %v1718 = vcombine.high %v1623, %v1639
        %v1720 = vunpack.c.l.s4 1983009808
        %v1721 = vunpack.c.0.s8 %v1720
        %v1722 = vlaneseq
        %v1723 = vshrl.u32 %v1722, 7
        %v1724 = vsub.s32 %v1721, %v1723
        %v1725 = vrot.slane %v1717, %v1724
        %v1727 = vunpack.c.l.s4 1983009808
        %v1728 = vunpack.c.0.s8 %v1727
        %v1729 = vlaneseq
        %v1730 = vshrl.u32 %v1729, 7
        %v1731 = vsub.s32 %v1728, %v1730
        %v1732 = vrot.slane %v1718, %v1731
        %v1733 = vcombine.low %v1631, %v1647
        %v1734 = vcombine.high %v1631, %v1647
        %v1736 = vunpack.c.l.s4 1983009808
        %v1737 = vunpack.c.0.s8 %v1736
        %v1738 = vlaneseq
        %v1739 = vshrl.u32 %v1738, 7
        %v1740 = vsub.s32 %v1737, %v1739
        %v1741 = vrot.slane %v1733, %v1740
        %v1743 = vunpack.c.l.s4 1983009808
        %v1744 = vunpack.c.0.s8 %v1743
        %v1745 = vlaneseq
        %v1746 = vshrl.u32 %v1745, 7
        %v1747 = vsub.s32 %v1744, %v1746
        %v1748 = vrot.slane %v1734, %v1747
        %v1749 = vcombine.low %v1725, %v1741
        %v1750 = vcombine.high %v1725, %v1741
        %v1752 = vunpack.c.l.s4 1934713408
        %v1753 = vunpack.c.0.s8 %v1752
        %v1754 = vlaneseq
        %v1755 = vshrl.u32 %v1754, 7
        %v1756 = vsub.s32 %v1753, %v1755
        %v1757 = vrot.slane %v1749, %v1756
        %v1759 = vunpack.c.l.s4 1934713408
        %v1760 = vunpack.c.0.s8 %v1759
        %v1761 = vlaneseq
        %v1762 = vshrl.u32 %v1761, 7
        %v1763 = vsub.s32 %v1760, %v1762
        %v1764 = vrot.slane %v1750, %v1763
        %v1765 = vcombine.low %v1732, %v1748
        %v1766 = vcombine.high %v1732, %v1748
        %v1768 = vunpack.c.l.s4 1934713408
        %v1769 = vunpack.c.0.s8 %v1768
        %v1770 = vlaneseq
        %v1771 = vshrl.u32 %v1770, 7
        %v1772 = vsub.s32 %v1769, %v1771
        %v1773 = vrot.slane %v1765, %v1772
        %v1775 = vunpack.c.l.s4 1934713408
        %v1776 = vunpack.c.0.s8 %v1775
        %v1777 = vlaneseq
        %v1778 = vshrl.u32 %v1777, 7
        %v1779 = vsub.s32 %v1776, %v1778
        %v1780 = vrot.slane %v1766, %v1779
        %v1781 = vcombine.high %v1757, 0
        %v1782 = vcombine.high %v1764, 0
        %v1783 = vcombine.high %v1773, 0
        %v1784 = vcombine.high %v1780, 0
        %1786 = vrot.lane.b32.xlu0 %v1757, 64
        %v1787 = vpop.permute.xlu0 %1786
        %1789 = vrot.lane.b32.xlu0 %v1781, 64
        %v1790 = vpop.permute.xlu0 %1789
        %1792 = vrot.lane.b32.xlu0 %v1764, 64
        %v1793 = vpop.permute.xlu0 %1792
        %1795 = vrot.lane.b32.xlu0 %v1782, 64
        %v1796 = vpop.permute.xlu0 %1795
        %1798 = vrot.lane.b32.xlu0 %v1773, 64
        %v1799 = vpop.permute.xlu0 %1798
        %1801 = vrot.lane.b32.xlu0 %v1783, 64
        %v1802 = vpop.permute.xlu0 %1801
        %1804 = vrot.lane.b32.xlu0 %v1780, 64
        %v1805 = vpop.permute.xlu0 %1804
        %1807 = vrot.lane.b32.xlu0 %v1784, 64
        %v1808 = vpop.permute.xlu0 %1807
        %vm1809 = vcmask 523264
        %v1812 = vsel %vm1809, %v1689, %v1787
        %v1815 = vsel %vm1809, %v1713, %v1790
        %v1818 = vsel %vm1809, %v1696, %v1793
        %v1821 = vsel %vm1809, %v1714, %v1796
        %v1824 = vsel %vm1809, %v1705, %v1799
        %v1827 = vsel %vm1809, %v1715, %v1802
        %v1830 = vsel %vm1809, %v1712, %v1805
        %v1833 = vsel %vm1809, %v1716, %v1808
        %v1834 = vcombine.low 0.0, 0.0
        %v1835 = vcombine.high 0.0, 0.0
        %v1837 = vunpack.c.l.s4 1983009808
        %v1838 = vunpack.c.0.s8 %v1837
        %v1839 = vlaneseq
        %v1840 = vshrl.u32 %v1839, 7
        %v1841 = vsub.s32 %v1838, %v1840
        %v1842 = vrot.slane %v1834, %v1841
        %v1844 = vunpack.c.l.s4 1983009808
        %v1845 = vunpack.c.0.s8 %v1844
        %v1846 = vlaneseq
        %v1847 = vshrl.u32 %v1846, 7
        %v1848 = vsub.s32 %v1845, %v1847
        %v1849 = vrot.slane %v1835, %v1848
        %v1850 = vcombine.low %v1842, %v1842
        %v1851 = vcombine.high %v1842, %v1842
        %v1853 = vunpack.c.l.s4 1934713408
        %v1854 = vunpack.c.0.s8 %v1853
        %v1855 = vlaneseq
        %v1856 = vshrl.u32 %v1855, 7
        %v1857 = vsub.s32 %v1854, %v1856
        %v1858 = vrot.slane %v1850, %v1857
        %v1860 = vunpack.c.l.s4 1934713408
        %v1861 = vunpack.c.0.s8 %v1860
        %v1862 = vlaneseq
        %v1863 = vshrl.u32 %v1862, 7
        %v1864 = vsub.s32 %v1861, %v1863
        %v1865 = vrot.slane %v1851, %v1864
        %v1866 = vcombine.low %v1849, %v1849
        %v1867 = vcombine.high %v1849, %v1849
        %v1869 = vunpack.c.l.s4 1934713408
        %v1870 = vunpack.c.0.s8 %v1869
        %v1871 = vlaneseq
        %v1872 = vshrl.u32 %v1871, 7
        %v1873 = vsub.s32 %v1870, %v1872
        %v1874 = vrot.slane %v1866, %v1873
        %v1876 = vunpack.c.l.s4 1934713408
        %v1877 = vunpack.c.0.s8 %v1876
        %v1878 = vlaneseq
        %v1879 = vshrl.u32 %v1878, 7
        %v1880 = vsub.s32 %v1877, %v1879
        %v1881 = vrot.slane %v1867, %v1880
        %v1882 = vcombine.low %v1858, %v1858
        %v1883 = vcombine.high %v1858, %v1858
        %v1884 = vcombine.low %v1865, %v1865
        %v1885 = vcombine.high %v1865, %v1865
        %v1886 = vcombine.low %v1874, %v1874
        %v1887 = vcombine.high %v1874, %v1874
        %v1888 = vcombine.low %v1881, %v1881
        %v1889 = vcombine.high %v1881, %v1881
        %1891 = vrot.lane.b32.xlu0 %v1883, 64
        %v1892 = vpop.permute.xlu0 %1891
        %1895 = vrot.lane.b32.xlu0 %v1885, 64
        %v1896 = vpop.permute.xlu0 %1895
        %1899 = vrot.lane.b32.xlu0 %v1887, 64
        %v1900 = vpop.permute.xlu0 %1899
        %1903 = vrot.lane.b32.xlu0 %v1889, 64
        %v1904 = vpop.permute.xlu0 %1903
        %v1906 = vsel %vm1809, %v1882, %v1892
        %v1907 = vsel %vm1809, %v1884, %v1896
        %v1908 = vsel %vm1809, %v1886, %v1900
        %v1909 = vsel %vm1809, %v1888, %v1904
        %vm1910 = vcmask 64512
        %v1912 = vsel %vm1910, %v1608, 0
        %vm1914 = vcmask 1043456
        %v1915 = vsel %vm1914, %v1812, 0
        %v1917 = vsel %vm1914, %v1815, 0
        %v1919 = vsel %vm1914, %v1818, 0
        %v1921 = vsel %vm1914, %v1821, 0
        %v1923 = vsel %vm1914, %v1824, 0
        %v1925 = vsel %vm1914, %v1827, 0
        %v1927 = vsel %vm1914, %v1830, 0
        %v1929 = vsel %vm1914, %v1833, 0
        %1931 = vmatprep.subr.bf16.mxu0 %v1917
        %1932 = vmatpush1.bf16.msra.mxu0 %v1915
        %1933 = vmatprep.subr.bf16.mxu0 0
        %1934 = vmatpush1.bf16.msra.mxu0 0
        %1935 = vmatprep.subr.bf16.mxu0 0
        %1936 = vmatpush1.bf16.msra.mxu0 0
        %1937 = vmatprep.subr.bf16.mxu0 0
        %1938 = vmatpush1.bf16.msra.mxu0 0
        %1939 = vmatprep.subr.bf16.mxu0 0
        %1940 = vmatpush1.bf16.msra.mxu0 0
        %1941 = vmatprep.subr.bf16.mxu0 0
        %1942 = vmatpush1.bf16.msra.mxu0 0
        %1943 = vmatprep.subr.bf16.mxu0 0
        %1944 = vmatpush1.bf16.msra.mxu0 0
        %1945 = vmatprep.subr.bf16.mxu0 0
        %1946 = vmatpush1.bf16.msra.mxu0 0
        %1947 = vmatprep.subr.bf16.mxu0 0
        %1948 = vmatpush1.bf16.msra.mxu0 0
        %1949 = vmatprep.subr.bf16.mxu0 0
        %1950 = vmatpush1.bf16.msra.mxu0 0
        %1951 = vmatprep.subr.bf16.mxu0 0
        %1952 = vmatpush1.bf16.msra.mxu0 0
        %1953 = vmatprep.subr.bf16.mxu0 0
        %1954 = vmatpush1.bf16.msra.mxu0 0
        %1955 = vmatprep.subr.bf16.mxu0 0
        %1956 = vmatpush1.bf16.msra.mxu0 0
        %1957 = vmatprep.subr.bf16.mxu0 0
        %1958 = vmatpush1.bf16.msra.mxu0 0
        %1959 = vmatprep.subr.bf16.mxu0 0
        %1960 = vmatpush1.bf16.msra.mxu0 0
        %1961 = vmatprep.subr.bf16.mxu0 0
        %1962 = vmatpush1.bf16.msra.mxu0 0
        %1963 = vmatprep.mubr.bf16.mxu0 0
        %1964 = vmatmul.mubr.bf16.gmra.mrb[0].mxu0 %v1912
        %v1965 = vpop.f32.mrb[0].mxu0
        %v1966 = vadd.f32 %v1906, %v1965
        %v1967 = vpop.f32.mrb[0].mxu0
        %v1968 = vadd.f32 %v1907, %v1967
        %v1969 = vpop.f32.mrb[0].mxu0
        %v1970 = vpop.f32.mrb[0].mxu0
        %1971 = vdwg.mxu0
        %1972 = vmatprep.subr.bf16.mxu0 %v1921
        %1973 = vmatpush1.bf16.msra.mxu0 %v1919
        %1974 = vmatprep.subr.bf16.mxu0 0
        %1975 = vmatpush1.bf16.msra.mxu0 0
        %1976 = vmatprep.subr.bf16.mxu0 0
        %1977 = vmatpush1.bf16.msra.mxu0 0
        %1978 = vmatprep.subr.bf16.mxu0 0
        %1979 = vmatpush1.bf16.msra.mxu0 0
        %1980 = vmatprep.subr.bf16.mxu0 0
        %1981 = vmatpush1.bf16.msra.mxu0 0
        %1982 = vmatprep.subr.bf16.mxu0 0
        %1983 = vmatpush1.bf16.msra.mxu0 0
        %1984 = vmatprep.subr.bf16.mxu0 0
        %1985 = vmatpush1.bf16.msra.mxu0 0
        %1986 = vmatprep.subr.bf16.mxu0 0
        %1987 = vmatpush1.bf16.msra.mxu0 0
        %1988 = vmatprep.subr.bf16.mxu0 0
        %1989 = vmatpush1.bf16.msra.mxu0 0
        %1990 = vmatprep.subr.bf16.mxu0 0
        %1991 = vmatpush1.bf16.msra.mxu0 0
        %1992 = vmatprep.subr.bf16.mxu0 0
        %1993 = vmatpush1.bf16.msra.mxu0 0
        %1994 = vmatprep.subr.bf16.mxu0 0
        %1995 = vmatpush1.bf16.msra.mxu0 0
        %1996 = vmatprep.subr.bf16.mxu0 0
        %1997 = vmatpush1.bf16.msra.mxu0 0
        %1998 = vmatprep.subr.bf16.mxu0 0
        %1999 = vmatpush1.bf16.msra.mxu0 0
        %2000 = vmatprep.subr.bf16.mxu0 0
        %2001 = vmatpush1.bf16.msra.mxu0 0
        %2002 = vmatprep.subr.bf16.mxu0 0
        %2003 = vmatpush1.bf16.msra.mxu0 0
        %2004 = vmatprep.mubr.bf16.mxu0 0
        %2005 = vmatmul.mubr.bf16.gmra.mrb[0].mxu0 %v1912
        %v2006 = vpop.f32.mrb[0].mxu0
        %v2007 = vadd.f32 %v1908, %v2006
        %v2008 = vpop.f32.mrb[0].mxu0
        %v2009 = vadd.f32 %v1909, %v2008
        %v2010 = vpop.f32.mrb[0].mxu0
        %v2011 = vpop.f32.mrb[0].mxu0
        %2012 = vdwg.mxu0
        %2013 = vmatprep.subr.bf16.mxu0 %v1925
        %2014 = vmatpush1.bf16.msra.mxu0 %v1923
        %2015 = vmatprep.subr.bf16.mxu0 0
        %2016 = vmatpush1.bf16.msra.mxu0 0
        %2017 = vmatprep.subr.bf16.mxu0 0
        %2018 = vmatpush1.bf16.msra.mxu0 0
        %2019 = vmatprep.subr.bf16.mxu0 0
        %2020 = vmatpush1.bf16.msra.mxu0 0
        %2021 = vmatprep.subr.bf16.mxu0 0
        %2022 = vmatpush1.bf16.msra.mxu0 0
        %2023 = vmatprep.subr.bf16.mxu0 0
        %2024 = vmatpush1.bf16.msra.mxu0 0
        %2025 = vmatprep.subr.bf16.mxu0 0
        %2026 = vmatpush1.bf16.msra.mxu0 0
        %2027 = vmatprep.subr.bf16.mxu0 0
        %2028 = vmatpush1.bf16.msra.mxu0 0
        %2029 = vmatprep.subr.bf16.mxu0 0
        %2030 = vmatpush1.bf16.msra.mxu0 0
        %2031 = vmatprep.subr.bf16.mxu0 0
        %2032 = vmatpush1.bf16.msra.mxu0 0
        %2033 = vmatprep.subr.bf16.mxu0 0
        %2034 = vmatpush1.bf16.msra.mxu0 0
        %2035 = vmatprep.subr.bf16.mxu0 0
        %2036 = vmatpush1.bf16.msra.mxu0 0
        %2037 = vmatprep.subr.bf16.mxu0 0
        %2038 = vmatpush1.bf16.msra.mxu0 0
        %2039 = vmatprep.subr.bf16.mxu0 0
        %2040 = vmatpush1.bf16.msra.mxu0 0
        %2041 = vmatprep.subr.bf16.mxu0 0
        %2042 = vmatpush1.bf16.msra.mxu0 0
        %2043 = vmatprep.subr.bf16.mxu0 0
        %2044 = vmatpush1.bf16.msra.mxu0 0
        %2045 = vmatprep.mubr.bf16.mxu0 0
        %2046 = vmatmul.mubr.bf16.gmra.mrb[0].mxu0 %v1912
        %v2047 = vpop.f32.mrb[0].mxu0
        %v2048 = vadd.f32 %v1906, %v2047
        %v2049 = vpop.f32.mrb[0].mxu0
        %v2050 = vadd.f32 %v1907, %v2049
        %v2051 = vpop.f32.mrb[0].mxu0
        %v2052 = vpop.f32.mrb[0].mxu0
        %2053 = vdwg.mxu0
        %2054 = vmatprep.subr.bf16.mxu0 %v1929
        %2055 = vmatpush1.bf16.msra.mxu0 %v1927
        %2056 = vmatprep.subr.bf16.mxu0 0
        %2057 = vmatpush1.bf16.msra.mxu0 0
        %2058 = vmatprep.subr.bf16.mxu0 0
        %2059 = vmatpush1.bf16.msra.mxu0 0
        %2060 = vmatprep.subr.bf16.mxu0 0
        %2061 = vmatpush1.bf16.msra.mxu0 0
        %2062 = vmatprep.subr.bf16.mxu0 0
        %2063 = vmatpush1.bf16.msra.mxu0 0
        %2064 = vmatprep.subr.bf16.mxu0 0
        %2065 = vmatpush1.bf16.msra.mxu0 0
        %2066 = vmatprep.subr.bf16.mxu0 0
        %2067 = vmatpush1.bf16.msra.mxu0 0
        %2068 = vmatprep.subr.bf16.mxu0 0
        %2069 = vmatpush1.bf16.msra.mxu0 0
        %2070 = vmatprep.subr.bf16.mxu0 0
        %2071 = vmatpush1.bf16.msra.mxu0 0
        %2072 = vmatprep.subr.bf16.mxu0 0
        %2073 = vmatpush1.bf16.msra.mxu0 0
        %2074 = vmatprep.subr.bf16.mxu0 0
        %2075 = vmatpush1.bf16.msra.mxu0 0
        %2076 = vmatprep.subr.bf16.mxu0 0
        %2077 = vmatpush1.bf16.msra.mxu0 0
        %2078 = vmatprep.subr.bf16.mxu0 0
        %2079 = vmatpush1.bf16.msra.mxu0 0
        %2080 = vmatprep.subr.bf16.mxu0 0
        %2081 = vmatpush1.bf16.msra.mxu0 0
        %2082 = vmatprep.subr.bf16.mxu0 0
        %2083 = vmatpush1.bf16.msra.mxu0 0
        %2084 = vmatprep.subr.bf16.mxu0 0
        %2085 = vmatpush1.bf16.msra.mxu0 0
        %2086 = vmatprep.mubr.bf16.mxu0 0
        %2087 = vmatmul.mubr.bf16.gmra.mrb[0].mxu0 %v1912
        %v2088 = vpop.f32.mrb[0].mxu0
        %v2089 = vadd.f32 %v1908, %v2088
        %v2090 = vpop.f32.mrb[0].mxu0
        %v2091 = vadd.f32 %v1909, %v2090
        %v2092 = vpop.f32.mrb[0].mxu0
        %v2093 = vpop.f32.mrb[0].mxu0
        %2094 = vdwg.mxu0
        %2096 = vrot.lane.b32.xlu0 %v1966, 64
        %v2097 = vpop.permute.xlu0 %2096
        %2100 = vrot.lane.b32.xlu0 %v1968, 64
        %v2101 = vpop.permute.xlu0 %2100
        %2104 = vrot.lane.b32.xlu0 %v2007, 64
        %v2105 = vpop.permute.xlu0 %2104
        %2108 = vrot.lane.b32.xlu0 %v2009, 64
        %v2109 = vpop.permute.xlu0 %2108
        %2112 = vrot.lane.b32.xlu0 %v2048, 64
        %v2113 = vpop.permute.xlu0 %2112
        %2116 = vrot.lane.b32.xlu0 %v2050, 64
        %v2117 = vpop.permute.xlu0 %2116
        %2120 = vrot.lane.b32.xlu0 %v2089, 64
        %v2121 = vpop.permute.xlu0 %2120
        %2124 = vrot.lane.b32.xlu0 %v2091, 64
        %v2125 = vpop.permute.xlu0 %2124
        %v2127 = vcombine.low %v1966, %v1968
        %v2128 = vcombine.high %v1966, %v1968
        %v2130 = vunpack.c.l.s4 1983009808
        %v2131 = vunpack.c.0.s8 %v2130
        %v2132 = vlaneseq
        %v2133 = vshrl.u32 %v2132, 7
        %v2134 = vsub.s32 %v2131, %v2133
        %v2135 = vrot.slane %v2127, %v2134
        %v2137 = vunpack.c.l.s4 1983009808
        %v2138 = vunpack.c.0.s8 %v2137
        %v2139 = vlaneseq
        %v2140 = vshrl.u32 %v2139, 7
        %v2141 = vsub.s32 %v2138, %v2140
        %v2142 = vrot.slane %v2128, %v2141
        %v2143 = vcombine.low %v2097, %v2101
        %v2144 = vcombine.high %v2097, %v2101
        %v2146 = vunpack.c.l.s4 1983009808
        %v2147 = vunpack.c.0.s8 %v2146
        %v2148 = vlaneseq
        %v2149 = vshrl.u32 %v2148, 7
        %v2150 = vsub.s32 %v2147, %v2149
        %v2151 = vrot.slane %v2143, %v2150
        %v2153 = vunpack.c.l.s4 1983009808
        %v2154 = vunpack.c.0.s8 %v2153
        %v2155 = vlaneseq
        %v2156 = vshrl.u32 %v2155, 7
        %v2157 = vsub.s32 %v2154, %v2156
        %v2158 = vrot.slane %v2144, %v2157
        %v2159 = vcombine.low %v2007, %v2009
        %v2160 = vcombine.high %v2007, %v2009
        %v2162 = vunpack.c.l.s4 1983009808
        %v2163 = vunpack.c.0.s8 %v2162
        %v2164 = vlaneseq
        %v2165 = vshrl.u32 %v2164, 7
        %v2166 = vsub.s32 %v2163, %v2165
        %v2167 = vrot.slane %v2159, %v2166
        %v2169 = vunpack.c.l.s4 1983009808
        %v2170 = vunpack.c.0.s8 %v2169
        %v2171 = vlaneseq
        %v2172 = vshrl.u32 %v2171, 7
        %v2173 = vsub.s32 %v2170, %v2172
        %v2174 = vrot.slane %v2160, %v2173
        %v2175 = vcombine.low %v2105, %v2109
        %v2176 = vcombine.high %v2105, %v2109
        %v2178 = vunpack.c.l.s4 1983009808
        %v2179 = vunpack.c.0.s8 %v2178
        %v2180 = vlaneseq
        %v2181 = vshrl.u32 %v2180, 7
        %v2182 = vsub.s32 %v2179, %v2181
        %v2183 = vrot.slane %v2175, %v2182
        %v2185 = vunpack.c.l.s4 1983009808
        %v2186 = vunpack.c.0.s8 %v2185
        %v2187 = vlaneseq
        %v2188 = vshrl.u32 %v2187, 7
        %v2189 = vsub.s32 %v2186, %v2188
        %v2190 = vrot.slane %v2176, %v2189
        %v2191 = vcombine.low %v2135, %v2151
        %v2192 = vcombine.high %v2135, %v2151
        %v2194 = vunpack.c.l.s4 1934713408
        %v2195 = vunpack.c.0.s8 %v2194
        %v2196 = vlaneseq
        %v2197 = vshrl.u32 %v2196, 7
        %v2198 = vsub.s32 %v2195, %v2197
        %v2199 = vrot.slane %v2191, %v2198
        %v2201 = vunpack.c.l.s4 1934713408
        %v2202 = vunpack.c.0.s8 %v2201
        %v2203 = vlaneseq
        %v2204 = vshrl.u32 %v2203, 7
        %v2205 = vsub.s32 %v2202, %v2204
        %v2206 = vrot.slane %v2192, %v2205
        %v2207 = vcombine.low %v2142, %v2158
        %v2208 = vcombine.high %v2142, %v2158
        %v2210 = vunpack.c.l.s4 1934713408
        %v2211 = vunpack.c.0.s8 %v2210
        %v2212 = vlaneseq
        %v2213 = vshrl.u32 %v2212, 7
        %v2214 = vsub.s32 %v2211, %v2213
        %v2215 = vrot.slane %v2207, %v2214
        %v2217 = vunpack.c.l.s4 1934713408
        %v2218 = vunpack.c.0.s8 %v2217
        %v2219 = vlaneseq
        %v2220 = vshrl.u32 %v2219, 7
        %v2221 = vsub.s32 %v2218, %v2220
        %v2222 = vrot.slane %v2208, %v2221
        %v2223 = vcombine.low %v2167, %v2183
        %v2224 = vcombine.high %v2167, %v2183
        %v2226 = vunpack.c.l.s4 1934713408
        %v2227 = vunpack.c.0.s8 %v2226
        %v2228 = vlaneseq
        %v2229 = vshrl.u32 %v2228, 7
        %v2230 = vsub.s32 %v2227, %v2229
        %v2231 = vrot.slane %v2223, %v2230
        %v2233 = vunpack.c.l.s4 1934713408
        %v2234 = vunpack.c.0.s8 %v2233
        %v2235 = vlaneseq
        %v2236 = vshrl.u32 %v2235, 7
        %v2237 = vsub.s32 %v2234, %v2236
        %v2238 = vrot.slane %v2224, %v2237
        %v2239 = vcombine.low %v2174, %v2190
        %v2240 = vcombine.high %v2174, %v2190
        %v2242 = vunpack.c.l.s4 1934713408
        %v2243 = vunpack.c.0.s8 %v2242
        %v2244 = vlaneseq
        %v2245 = vshrl.u32 %v2244, 7
        %v2246 = vsub.s32 %v2243, %v2245
        %v2247 = vrot.slane %v2239, %v2246
        %v2249 = vunpack.c.l.s4 1934713408
        %v2250 = vunpack.c.0.s8 %v2249
        %v2251 = vlaneseq
        %v2252 = vshrl.u32 %v2251, 7
        %v2253 = vsub.s32 %v2250, %v2252
        %v2254 = vrot.slane %v2240, %v2253
        %v2255 = vcombine.low %v2199, %v2231
        %v2256 = vcombine.high %v2199, %v2231
        %v2257 = vcombine.low %v2206, %v2238
        %v2258 = vcombine.high %v2206, %v2238
        %v2259 = vcombine.low %v2215, %v2247
        %v2260 = vcombine.high %v2215, %v2247
        %v2261 = vcombine.low %v2222, %v2254
        %v2262 = vcombine.high %v2222, %v2254
        %v2263 = vcombine.low %v2048, %v2050
        %v2264 = vcombine.high %v2048, %v2050
        %v2266 = vunpack.c.l.s4 1983009808
        %v2267 = vunpack.c.0.s8 %v2266
        %v2268 = vlaneseq
        %v2269 = vshrl.u32 %v2268, 7
        %v2270 = vsub.s32 %v2267, %v2269
        %v2271 = vrot.slane %v2263, %v2270
        %v2273 = vunpack.c.l.s4 1983009808
        %v2274 = vunpack.c.0.s8 %v2273
        %v2275 = vlaneseq
        %v2276 = vshrl.u32 %v2275, 7
        %v2277 = vsub.s32 %v2274, %v2276
        %v2278 = vrot.slane %v2264, %v2277
        %v2279 = vcombine.low %v2113, %v2117
        %v2280 = vcombine.high %v2113, %v2117
        %v2282 = vunpack.c.l.s4 1983009808
        %v2283 = vunpack.c.0.s8 %v2282
        %v2284 = vlaneseq
        %v2285 = vshrl.u32 %v2284, 7
        %v2286 = vsub.s32 %v2283, %v2285
        %v2287 = vrot.slane %v2279, %v2286
        %v2289 = vunpack.c.l.s4 1983009808
        %v2290 = vunpack.c.0.s8 %v2289
        %v2291 = vlaneseq
        %v2292 = vshrl.u32 %v2291, 7
        %v2293 = vsub.s32 %v2290, %v2292
        %v2294 = vrot.slane %v2280, %v2293
        %v2295 = vcombine.low %v2089, %v2091
        %v2296 = vcombine.high %v2089, %v2091
        %v2298 = vunpack.c.l.s4 1983009808
        %v2299 = vunpack.c.0.s8 %v2298
        %v2300 = vlaneseq
        %v2301 = vshrl.u32 %v2300, 7
        %v2302 = vsub.s32 %v2299, %v2301
        %v2303 = vrot.slane %v2295, %v2302
        %v2305 = vunpack.c.l.s4 1983009808
        %v2306 = vunpack.c.0.s8 %v2305
        %v2307 = vlaneseq
        %v2308 = vshrl.u32 %v2307, 7
        %v2309 = vsub.s32 %v2306, %v2308
        %v2310 = vrot.slane %v2296, %v2309
        %v2311 = vcombine.low %v2121, %v2125
        %v2312 = vcombine.high %v2121, %v2125
        %v2314 = vunpack.c.l.s4 1983009808
        %v2315 = vunpack.c.0.s8 %v2314
        %v2316 = vlaneseq
        %v2317 = vshrl.u32 %v2316, 7
        %v2318 = vsub.s32 %v2315, %v2317
        %v2319 = vrot.slane %v2311, %v2318
        %v2321 = vunpack.c.l.s4 1983009808
        %v2322 = vunpack.c.0.s8 %v2321
        %v2323 = vlaneseq
        %v2324 = vshrl.u32 %v2323, 7
        %v2325 = vsub.s32 %v2322, %v2324
        %v2326 = vrot.slane %v2312, %v2325
        %v2327 = vcombine.low %v2271, %v2287
        %v2328 = vcombine.high %v2271, %v2287
        %v2330 = vunpack.c.l.s4 1934713408
        %v2331 = vunpack.c.0.s8 %v2330
        %v2332 = vlaneseq
        %v2333 = vshrl.u32 %v2332, 7
        %v2334 = vsub.s32 %v2331, %v2333
        %v2335 = vrot.slane %v2327, %v2334
        %v2337 = vunpack.c.l.s4 1934713408
        %v2338 = vunpack.c.0.s8 %v2337
        %v2339 = vlaneseq
        %v2340 = vshrl.u32 %v2339, 7
        %v2341 = vsub.s32 %v2338, %v2340
        %v2342 = vrot.slane %v2328, %v2341
        %v2343 = vcombine.low %v2278, %v2294
        %v2344 = vcombine.high %v2278, %v2294
        %v2346 = vunpack.c.l.s4 1934713408
        %v2347 = vunpack.c.0.s8 %v2346
        %v2348 = vlaneseq
        %v2349 = vshrl.u32 %v2348, 7
        %v2350 = vsub.s32 %v2347, %v2349
        %v2351 = vrot.slane %v2343, %v2350
        %v2353 = vunpack.c.l.s4 1934713408
        %v2354 = vunpack.c.0.s8 %v2353
        %v2355 = vlaneseq
        %v2356 = vshrl.u32 %v2355, 7
        %v2357 = vsub.s32 %v2354, %v2356
        %v2358 = vrot.slane %v2344, %v2357
        %v2359 = vcombine.low %v2303, %v2319
        %v2360 = vcombine.high %v2303, %v2319
        %v2362 = vunpack.c.l.s4 1934713408
        %v2363 = vunpack.c.0.s8 %v2362
        %v2364 = vlaneseq
        %v2365 = vshrl.u32 %v2364, 7
        %v2366 = vsub.s32 %v2363, %v2365
        %v2367 = vrot.slane %v2359, %v2366
        %v2369 = vunpack.c.l.s4 1934713408
        %v2370 = vunpack.c.0.s8 %v2369
        %v2371 = vlaneseq
        %v2372 = vshrl.u32 %v2371, 7
        %v2373 = vsub.s32 %v2370, %v2372
        %v2374 = vrot.slane %v2360, %v2373
        %v2375 = vcombine.low %v2310, %v2326
        %v2376 = vcombine.high %v2310, %v2326
        %v2378 = vunpack.c.l.s4 1934713408
        %v2379 = vunpack.c.0.s8 %v2378
        %v2380 = vlaneseq
        %v2381 = vshrl.u32 %v2380, 7
        %v2382 = vsub.s32 %v2379, %v2381
        %v2383 = vrot.slane %v2375, %v2382
        %v2385 = vunpack.c.l.s4 1934713408
        %v2386 = vunpack.c.0.s8 %v2385
        %v2387 = vlaneseq
        %v2388 = vshrl.u32 %v2387, 7
        %v2389 = vsub.s32 %v2386, %v2388
        %v2390 = vrot.slane %v2376, %v2389
        %v2391 = vcombine.low %v2335, %v2367
        %v2392 = vcombine.high %v2335, %v2367
        %v2393 = vcombine.low %v2342, %v2374
        %v2394 = vcombine.high %v2342, %v2374
        %v2395 = vcombine.low %v2351, %v2383
        %v2396 = vcombine.high %v2351, %v2383
        %v2397 = vcombine.low %v2358, %v2390
        %v2398 = vcombine.high %v2358, %v2390
        %v2399 = vmul.f32 %v1546, %v2255
        %v2400 = vmul.f32 %v1549, %v2391
        %v2401 = vmul.f32 %v1554, %v2256
        %v2402 = vmul.f32 %v1557, %v2392
        %v2403 = vmul.f32 %v1562, %v2257
        %v2404 = vmul.f32 %v1565, %v2393
        %v2405 = vmul.f32 %v1570, %v2258
        %v2406 = vmul.f32 %v1573, %v2394
        %v2407 = vmul.f32 %v1578, %v2259
        %v2408 = vmul.f32 %v1581, %v2395
        %v2409 = vmul.f32 %v1586, %v2260
        %v2410 = vmul.f32 %v1589, %v2396
        %v2411 = vmul.f32 %v1594, %v2261
        %v2412 = vmul.f32 %v1597, %v2397
        %v2413 = vmul.f32 %v1602, %v2262
        %v2414 = vmul.f32 %v1605, %v2398
        %2431 = vrot.lane.b32.xlu0 %v2255, 96
        %v2432 = vpop.permute.xlu0 %2431
        %2433 = vrot.lane.b32.xlu0 %v2391, 96
        %v2434 = vpop.permute.xlu0 %2433
        %2435 = vrot.lane.b32.xlu0 %v2256, 96
        %v2436 = vpop.permute.xlu0 %2435
        %2437 = vrot.lane.b32.xlu0 %v2392, 96
        %v2438 = vpop.permute.xlu0 %2437
        %2439 = vrot.lane.b32.xlu0 %v2257, 96
        %v2440 = vpop.permute.xlu0 %2439
        %2441 = vrot.lane.b32.xlu0 %v2393, 96
        %v2442 = vpop.permute.xlu0 %2441
        %2443 = vrot.lane.b32.xlu0 %v2258, 96
        %v2444 = vpop.permute.xlu0 %2443
        %2445 = vrot.lane.b32.xlu0 %v2394, 96
        %v2446 = vpop.permute.xlu0 %2445
        %2447 = vrot.lane.b32.xlu0 %v2259, 96
        %v2448 = vpop.permute.xlu0 %2447
        %2449 = vrot.lane.b32.xlu0 %v2395, 96
        %v2450 = vpop.permute.xlu0 %2449
        %2451 = vrot.lane.b32.xlu0 %v2260, 96
        %v2452 = vpop.permute.xlu0 %2451
        %2453 = vrot.lane.b32.xlu0 %v2396, 96
        %v2454 = vpop.permute.xlu0 %2453
        %2455 = vrot.lane.b32.xlu0 %v2261, 96
        %v2456 = vpop.permute.xlu0 %2455
        %2457 = vrot.lane.b32.xlu0 %v2397, 96
        %v2458 = vpop.permute.xlu0 %2457
        %2459 = vrot.lane.b32.xlu0 %v2262, 96
        %v2460 = vpop.permute.xlu0 %2459
        %2461 = vrot.lane.b32.xlu0 %v2398, 96
        %v2462 = vpop.permute.xlu0 %2461
        %v2479 = vadd.f32 %v2399, %v2432
        %v2480 = vadd.f32 %v2400, %v2434
        %v2481 = vadd.f32 %v2401, %v2436
        %v2482 = vadd.f32 %v2402, %v2438
        %v2483 = vadd.f32 %v2403, %v2440
        %v2484 = vadd.f32 %v2404, %v2442
        %v2485 = vadd.f32 %v2405, %v2444
        %v2486 = vadd.f32 %v2406, %v2446
        %v2487 = vadd.f32 %v2407, %v2448
        %v2488 = vadd.f32 %v2408, %v2450
        %v2489 = vadd.f32 %v2409, %v2452
        %v2490 = vadd.f32 %v2410, %v2454
        %v2491 = vadd.f32 %v2411, %v2456
        %v2492 = vadd.f32 %v2412, %v2458
        %v2493 = vadd.f32 %v2413, %v2460
        %v2494 = vadd.f32 %v2414, %v2462
        %v2495 = vpack.c.bf16 %v2480, %v2479
        %v2496 = vpack.c.bf16 %v2482, %v2481
        %v2497 = vpack.c.bf16 %v2484, %v2483
        %v2498 = vpack.c.bf16 %v2486, %v2485
        %v2499 = vpack.c.bf16 %v2488, %v2487
        %v2500 = vpack.c.bf16 %v2490, %v2489
        %v2501 = vpack.c.bf16 %v2492, %v2491
        %v2502 = vpack.c.bf16 %v2494, %v2493
        %v2511 = vunpack.c.l.b16 %v2495
        %v2512 = vunpack.c.h.b16 %v2495
        %v2513 = vunpack.c.l.b16 %v2496
        %v2514 = vunpack.c.h.b16 %v2496
        %v2515 = vunpack.c.l.b16 %v2497
        %v2516 = vunpack.c.h.b16 %v2497
        %v2517 = vunpack.c.l.b16 %v2498
        %v2518 = vunpack.c.h.b16 %v2498
        %v2519 = vunpack.c.l.b16 %v2499
        %v2520 = vunpack.c.h.b16 %v2499
        %v2521 = vunpack.c.l.b16 %v2500
        %v2522 = vunpack.c.h.b16 %v2500
        %v2523 = vunpack.c.l.b16 %v2501
        %v2524 = vunpack.c.h.b16 %v2501
        %v2525 = vunpack.c.l.b16 %v2502
        %v2526 = vunpack.c.h.b16 %v2502
        %v2527 = vpack.c.b16 %v2511, %v2511
        %v2528 = vpack.c.b16 %v2512, %v2512
        %v2529 = vpack.c.b16 %v2513, %v2513
        %v2530 = vpack.c.b16 %v2514, %v2514
        %v2531 = vpack.c.b16 %v2515, %v2515
        %v2532 = vpack.c.b16 %v2516, %v2516
        %v2533 = vpack.c.b16 %v2517, %v2517
        %v2534 = vpack.c.b16 %v2518, %v2518
        %v2535 = vpack.c.b16 %v2519, %v2519
        %v2536 = vpack.c.b16 %v2520, %v2520
        %v2537 = vpack.c.b16 %v2521, %v2521
        %v2538 = vpack.c.b16 %v2522, %v2522
        %v2539 = vpack.c.b16 %v2523, %v2523
        %v2540 = vpack.c.b16 %v2524, %v2524
        %v2541 = vpack.c.b16 %v2525, %v2525
        %v2542 = vpack.c.b16 %v2526, %v2526
        %vm2559 = vcmask 257024
        %2560 = vst.msk [vmem:[%s426] sm:$0xf] %vm2559, %v2527
        %2561 = vst.msk [vmem:[%s426 + $0x4] sm:$0xf] %vm2559, %v2528
        %2562 = vst.msk [vmem:[%s426 + $0x8] sm:$0xf] %vm2559, %v2529
        %2563 = vst.msk [vmem:[%s426 + $0xc] sm:$0xf] %vm2559, %v2530
        %2564 = vst.msk [vmem:[%s426 + $0x10] sm:$0xf] %vm2559, %v2531
        %2565 = vst.msk [vmem:[%s426 + $0x14] sm:$0xf] %vm2559, %v2532
        %2566 = vst.msk [vmem:[%s426 + $0x18] sm:$0xf] %vm2559, %v2533
        %2567 = vst.msk [vmem:[%s426 + $0x1c] sm:$0xf] %vm2559, %v2534
        %2568 = vst.msk [vmem:[%s426 + $0x20] sm:$0xf] %vm2559, %v2535
        %2569 = vst.msk [vmem:[%s426 + $0x24] sm:$0xf] %vm2559, %v2536
        %2570 = vst.msk [vmem:[%s426 + $0x28] sm:$0xf] %vm2559, %v2537
        %2571 = vst.msk [vmem:[%s426 + $0x2c] sm:$0xf] %vm2559, %v2538
        %2572 = vst.msk [vmem:[%s426 + $0x30] sm:$0xf] %vm2559, %v2539
        %2573 = vst.msk [vmem:[%s426 + $0x34] sm:$0xf] %vm2559, %v2540
        %2574 = vst.msk [vmem:[%s426 + $0x38] sm:$0xf] %vm2559, %v2541
        %2575 = vst.msk [vmem:[%s426 + $0x3c] sm:$0xf] %vm2559, %v2542
        %v2576 = vld [vmem:[%s432] sm:$0x1]
        %vm2577 = vcmask 261120
        %v2578 = vsel %vm2577, %v2479, 0.0
        %v2579 = vsel %vm2577, %v2480, 0.0
        %v2580 = vadd.f32 %v2578, %v2579
        %v2581 = vsel %vm2577, %v2481, 0.0
        %v2582 = vadd.f32 %v2580, %v2581
        %v2583 = vsel %vm2577, %v2482, 0.0
        %v2584 = vadd.f32 %v2582, %v2583
        %v2585 = vsel %vm2577, %v2483, 0.0
        %v2586 = vadd.f32 %v2584, %v2585
        %v2587 = vsel %vm2577, %v2484, 0.0
        %v2588 = vadd.f32 %v2586, %v2587
        %v2589 = vsel %vm2577, %v2485, 0.0
        %v2590 = vadd.f32 %v2588, %v2589
        %v2591 = vsel %vm2577, %v2486, 0.0
        %v2592 = vadd.f32 %v2590, %v2591
        %v2593 = vsel %vm2577, %v2487, 0.0
        %v2594 = vadd.f32 %v2592, %v2593
        %v2595 = vsel %vm2577, %v2488, 0.0
        %v2596 = vadd.f32 %v2594, %v2595
        %v2597 = vsel %vm2577, %v2489, 0.0
        %v2598 = vadd.f32 %v2596, %v2597
        %v2599 = vsel %vm2577, %v2490, 0.0
        %v2600 = vadd.f32 %v2598, %v2599
        %v2601 = vsel %vm2577, %v2491, 0.0
        %v2602 = vadd.f32 %v2600, %v2601
        %v2603 = vsel %vm2577, %v2492, 0.0
        %v2604 = vadd.f32 %v2602, %v2603
        %v2605 = vsel %vm2577, %v2493, 0.0
        %v2606 = vadd.f32 %v2604, %v2605
        %v2607 = vsel %vm2577, %v2494, 0.0
        %v2608 = vadd.f32 %v2606, %v2607
        %v2609 = vrot.slane %v2608, 4
        %v2610 = vadd.f32 %v2608, %v2609
        %v2611 = vrot.slane %v2610, 2
        %v2612 = vadd.f32 %v2610, %v2611
        %v2613 = vrot.slane %v2612, 1
        %v2614 = vadd.f32 %v2612, %v2613
        %v2615 = vadd.f32 %v2576, %v2614
        %vm2616 = vcmask 253952
        %2617 = vst.msk [vmem:[%s432] sm:$0x1] %vm2616, %v2615
        %s2618 = sand.u32 %s240, 1
        %s2619 = scalar_lea.sflag [#allocation5], %s2618
        %s2620 = sand.u32 %s240, 1
        %s2621 = smul.addr %s2620, 64
        %s2622 = scalar_lea.vmem [#allocation8], %s2621
        %s2623 = sand.u32 %s266, 1
        %s2624 = scalar_lea.sflag [#allocation10], %s2623
        %s2625 = sand.u32 %s266, 1
        %s2626 = scalar_lea.vmem [#allocation9], %s2625
        // Predicated region
        $region65: #{tpu_custom_call.1} parent=51 // pred_check
          %p2627 = pneg %p250
        $region66: #{tpu_custom_call.1} parent=51 // pred_check_branch
          %2629 = sbr.rel (%p2627) target = $region68
        $region67: #{tpu_custom_call.1} parent=51 // pred_region
          %s2630 = smul.u32 8, %s38
          %s2632 = ssub.s32 1024, 1024
          %2633 = vsyncadd %s2619, %s2632
          %s2634 = smul.addr %s2630, 2
          %s2635 = smul.addr %s37, 32
          %s2636 = sadd.s32 %s2634, %s2635
          %s2637 = smul.addr %s2636, 64
          %s2638 = scalar_lea.hbm %s8, %s2637
          %s2639 = sshll.u32 %s2622, 4
          %s2640 = int_to_ptr.vmem [resolvable:$true] %s2639
          %2645 = dma.vmem_to_hbm [thread:$0]  %s2640, 1024, %s2638, %s2619, 64, 64, 4
        $region68: #{tpu_custom_call.1} parent=51 // pred_fallthru
          _
        // Predicated region
        $region69: #{tpu_custom_call.1} parent=51 // pred_check
          %p2646 = pneg %p276
        $region70: #{tpu_custom_call.1} parent=51 // pred_check_branch
          %2648 = sbr.rel (%p2646) target = $region72
        $region71: #{tpu_custom_call.1} parent=51 // pred_region
          %s2650 = ssub.s32 16, 16
          %2651 = vsyncadd %s2624, %s2650
          %s2652 = smul.addr %s37, 16
          %s2653 = scalar_lea.hbm %s9, %s2652
          %s2655 = sshll.u32 %s2626, 4
          %s2656 = int_to_ptr.vmem [resolvable:$true] %s2655
          %2658 = dma.vmem_to_hbm [thread:$0]  %s2656, 16, %s2653, %s2624
        $region72: #{tpu_custom_call.1} parent=51 // pred_fallthru
          _
      $region52: #{tpu_custom_call.1} parent=5 // pred_fallthru
        _
      %p2659 = scmp.le.s32.totalorder 2, %s28
      // Predicated region
      $region73: #{tpu_custom_call.1} parent=5 // pred_check
        %p2660 = pneg %p2659
      $region74: #{tpu_custom_call.1} parent=5 // pred_check_branch
        %2662 = sbr.rel (%p2660) target = $region76
      $region75: #{tpu_custom_call.1} parent=5 // pred_region
        %s2663 = ssub.s32 %s28, 2
        // Predicated region
        $region77: #{tpu_custom_call.1} parent=75 // pred_check
          %p2664 = pneg %p256
        $region78: #{tpu_custom_call.1} parent=75 // pred_check_branch
          %2666 = sbr.rel (%p2664) target = $region80
        $region79: #{tpu_custom_call.1} parent=75 // pred_region
          %s2667 = sand.u32 %s241, 1
          %s2668 = scalar_lea.sflag [#allocation5], %s2667
          %s2669 = sand.u32 %s241, 1
          %s2670 = smul.addr %s2669, 64
          %s2671 = scalar_lea.vmem [#allocation8], %s2670
          %2672 = dma.done %s2668, 1024
        $region80: #{tpu_custom_call.1} parent=75 // pred_fallthru
          _
        // Predicated region
        $region81: #{tpu_custom_call.1} parent=75 // pred_check
          %p2673 = pneg %p282
        $region82: #{tpu_custom_call.1} parent=75 // pred_check_branch
          %2675 = sbr.rel (%p2673) target = $region84
        $region83: #{tpu_custom_call.1} parent=75 // pred_region
          %s2676 = sand.u32 %s267, 1
          %s2677 = scalar_lea.sflag [#allocation10], %s2676
          %s2678 = sand.u32 %s267, 1
          %s2679 = scalar_lea.vmem [#allocation9], %s2678
          %2680 = dma.done %s2677, 16
        $region84: #{tpu_custom_call.1} parent=75 // pred_fallthru
          _
      $region76: #{tpu_custom_call.1} parent=5 // pred_fallthru
        _
    $region6: #{tpu_custom_call.1} parent=1 // loop_footer
      %s32 = sadd.s32 1, %s28
    $region7: #{tpu_custom_call.1} parent=1 // loop_footer_branch
      %27 = sbr.rel target = $region3
    $region8: #{tpu_custom_call.1} parent=1 // loop_exit
      _
    %2681 = vsyncpa [#allocation4], 1
    %s2682 = scalar_lea.sflag [#allocation4], 1
    %2683 = vsyncpa %s2682, 1
    %2684 = vsyncpa [#allocation7], 1
    %s2685 = scalar_lea.sflag [#allocation7], 1
    %2686 = vsyncpa %s2685, 1
    %2687 = vsyncpa [#allocation5], 1
    %s2688 = scalar_lea.sflag [#allocation5], 1
    %2689 = vsyncpa %s2688, 1
    %2690 = vsyncpa [#allocation10], 1
    %s2691 = scalar_lea.sflag [#allocation10], 1
    %2692 = vsyncpa %s2691, 1

</llo_original>
